<compile_context>
chip_gen: v5e
topology: v5e:2x2
jax: 0.10.0
libtpu: 0.0.40
codegen_flags: <defaults>
</compile_context>

<pallas_src>
import functools
import math

import numpy as np
import jax
import jax.numpy as jnp
from jax.experimental import pallas as pl
from jax.experimental.pallas import tpu as pltpu


def _layer_norm(x, gamma, beta, eps=1e-5):
    # PyTorch LayerNorm: biased variance, eps inside sqrt. gamma/beta are (1, H).
    mu = jnp.mean(x, axis=-1, keepdims=True)
    var = jnp.mean((x - mu) ** 2, axis=-1, keepdims=True)
    return (x - mu) * jax.lax.rsqrt(var + eps) * gamma + beta


def _block_kernel(num_heads, head_dim, tq, compute_dtype,
                  xf_ref, xt_ref,
                  wqkv_ref, bqkv_ref,
                  wout_ref, bout_ref,
                  wff1_ref, bff1_ref,
                  wff2_ref, bff2_ref,
                  g1_ref, b1_ref, g2_ref, b2_ref,
                  o_ref,
                  q_s, k_s, v_s):
    H = num_heads * head_dim
    S = k_s.shape[1]
    ri = pl.program_id(1)
    approx_recip = compute_dtype != jnp.float32  # EUP vrcp on the bf16 fast path

    # ---- Once per batch element (row-tile 0): LN1 + fused QKV over the full sequence ----
    @pl.when(ri == 0)
    def _():
        xfull = xf_ref[0].astype(jnp.float32)                         # (S, H)
        xn = _layer_norm(xfull, g1_ref[...], b1_ref[...])
        qkv = jnp.dot(xn.astype(compute_dtype), wqkv_ref[...],
                      preferred_element_type=jnp.float32) + bqkv_ref[...]   # (S, 3H) f32
        qkv = qkv.astype(compute_dtype)
        # Packed column layout: [Q(head-major) | K | V]; fill per-head scratch slabs once.
        for h in range(num_heads):
            q_s[h] = qkv[:, h * head_dim:(h + 1) * head_dim]
            k_s[h] = qkv[:, H + h * head_dim:H + (h + 1) * head_dim]
            v_s[h] = qkv[:, 2 * H + h * head_dim:2 * H + (h + 1) * head_dim]

    # ---- Per query-row tile: attention + out-proj + residual + LN2 + FFN + residual ----
    if tq == S:
        q = q_s[...]                                                  # (nh, S, hd)
    else:
        row0 = pl.multiple_of(ri * tq, tq)
        q = q_s[:, pl.ds(row0, tq), :]                                # (nh, tq, hd)
    k = k_s[...]                                                      # (nh, S, hd)
    v = v_s[...]                                                      # (nh, S, hd)

    scale = 1.0 / math.sqrt(head_dim)
    s = jnp.einsum('hqd,hkd->hqk', q, k,
                   preferred_element_type=jnp.float32) * scale        # (nh, tq, S) f32
    s = s - jnp.max(s, axis=-1, keepdims=True)
    p = jnp.exp(s)
    p = p * pl.reciprocal(jnp.sum(p, axis=-1, keepdims=True), approx=approx_recip)
    a = jnp.einsum('hqk,hkd->hqd', p.astype(compute_dtype), v,
                   preferred_element_type=jnp.float32)                # (nh, tq, hd) f32

    # Out-projection batched per head then summed: sum_h a_h @ wout[h*hd:(h+1)*hd, :].
    # Identical math to (concat heads) @ wout, but avoids a head->lane transpose/concat.
    c = jnp.einsum('hqd,hdo->hqo', a.astype(compute_dtype), wout_ref[...],
                   preferred_element_type=jnp.float32)                # (nh, tq, H) f32
    attn_out = jnp.sum(c, axis=0) + bout_ref[...]                     # (tq, H)

    x_t = xt_ref[0].astype(jnp.float32)                               # (tq, H)
    x1 = x_t + attn_out                                               # residual 1

    xn2 = _layer_norm(x1, g2_ref[...], b2_ref[...])
    hid = jnp.dot(xn2.astype(compute_dtype), wff1_ref[...],
                  preferred_element_type=jnp.float32) + bff1_ref[...]
    hid = jnp.maximum(hid, 0.0)                                       # ReLU
    ff = jnp.dot(hid.astype(compute_dtype), wff2_ref[...],
                 preferred_element_type=jnp.float32) + bff2_ref[...]
    # Dropout: eval mode => identity.
    o_ref[0] = (x1 + ff).astype(o_ref.dtype)                          # residual 2


def transformer_block_pallas(x, params, num_heads, *, q_tile=256,
                             compute_dtype=jnp.bfloat16):
    B, S, H = x.shape
    assert H % num_heads == 0, "hidden_size must be divisible by num_heads"
    hd = H // num_heads

    # Query-row tile size: bound per-step intermediates ((nh,TQ,S) scores, (TQ,4H) hidden).
    tq = S if S <= q_tile else q_tile
    assert S % tq == 0 and (tq % 8 == 0 or tq == S), \
        "sequence length must be divisible by the row tile (tile multiple of 8)"
    n_tiles = S // tq

    cdt = jnp.dtype(compute_dtype)

    # ---- Wrapper-side (free) repacking -------------------------------------------------
    # PyTorch qkv.view(B,S,nh,3*hd): column h*3hd + c*hd + d  (c in {q,k,v}).
    # Permute columns to [Q(head-major) | K | V] so per-head slabs are contiguous.
    idx = np.arange(3 * H).reshape(num_heads, 3, hd)       # [h, c, d] -> original column
    perm = idx.transpose(1, 0, 2).reshape(3 * H)           # new order: c-major, head, d
    wqkv_p = params["wqkv"][:, perm].astype(cdt)           # (H, 3H) bf16
    bqkv_p = params["bqkv"][:, perm]                       # (1, 3H) f32
    wout3 = params["wout"].reshape(num_heads, hd, H).astype(cdt)   # (nh, hd, H)
    wff1_c = params["wff1"].astype(cdt)
    wff2_c = params["wff2"].astype(cdt)
    x_c = x.astype(cdt)

    # ---- VMEM budget & cost estimate ----------------------------------------------------
    ic = cdt.itemsize
    oc = jnp.dtype(x.dtype).itemsize
    weight_bytes = (3 * H * H + H * H + 4 * H * H + 4 * H * H) * ic
    scratch_bytes = 3 * num_heads * S * max(hd, 128) * ic
    block_bytes = 2 * ((S * H + tq * H) * ic + tq * H * oc)
    tmp_bytes = 4 * (num_heads * tq * S + num_heads * tq * H + tq * 4 * H + 3 * S * H)
    est = 2 * weight_bytes + scratch_bytes + block_bytes + tmp_bytes + (2 << 20)
    try:
        cap = int(pltpu.get_tpu_info().vmem_capacity_bytes * 0.9)
    except Exception:  # pragma: no cover - conservative fallback (v7x has 64 MiB/TC)
        cap = 64 * 1024 * 1024
    # If est > cap at huge configs, lower q_tile (or stream FFN weights from HBM).
    vmem_limit = int(min(max(est, 16 * 1024 * 1024), cap))

    flops = int(B * (24 * S * H * H + 4 * S * S * H))
    transcendentals = int(B * (num_heads * S * S + 4 * S))
    bytes_accessed = int(weight_bytes + 2 * B * S * H * ic + B * S * H * oc)
    cost = pl.CostEstimate(flops=flops, transcendentals=transcendentals,
                           bytes_accessed=bytes_accessed)

    def wspec(arr):
        nd = arr.ndim
        return pl.BlockSpec(arr.shape, lambda b, r, _n=nd: (0,) * _n)

    kernel = functools.partial(_block_kernel, num_heads, hd, tq, cdt)

    return pl.pallas_call(
        kernel,
        out_shape=jax.ShapeDtypeStruct((B, S, H), x.dtype),
        grid_spec=pltpu.PrefetchScalarGridSpec(
            num_scalar_prefetch=0,
            grid=(B, n_tiles),
            in_specs=[
                pl.BlockSpec((1, S, H), lambda b, r: (b, 0, 0)),    # x, full sequence (QKV)
                pl.BlockSpec((1, tq, H), lambda b, r: (b, r, 0)),   # x, row tile (residual)
                wspec(wqkv_p), wspec(bqkv_p),
                wspec(wout3), wspec(params["bout"]),
                wspec(wff1_c), wspec(params["bff1"]),
                wspec(wff2_c), wspec(params["bff2"]),
                wspec(params["g1"]), wspec(params["b1"]),
                wspec(params["g2"]), wspec(params["b2"]),
            ],
            out_specs=pl.BlockSpec((1, tq, H), lambda b, r: (b, r, 0)),
            scratch_shapes=[
                pltpu.VMEM((num_heads, S, hd), cdt),   # Q (head-major)
                pltpu.VMEM((num_heads, S, hd), cdt),   # K
                pltpu.VMEM((num_heads, S, hd), cdt),   # V
            ],
        ),
        compiler_params=pltpu.CompilerParams(
            dimension_semantics=("parallel", "arbitrary"),
            vmem_limit_bytes=vmem_limit),
        cost_estimate=cost,
    )(x_c, x_c, wqkv_p, bqkv_p, wout3, params["bout"], wff1_c, params["bff1"],
      wff2_c, params["bff2"], params["g1"], params["b1"], params["g2"], params["b2"])


def _init_params(key, hidden_size):
    H = hidden_size
    ks = jax.random.split(key, 8)

    def lin(k, fan_in, fan_out):
        bound = 1.0 / math.sqrt(fan_in)
        kw, kb = jax.random.split(k)
        w = jax.random.uniform(kw, (fan_in, fan_out), jnp.float32, -bound, bound)
        b = jax.random.uniform(kb, (1, fan_out), jnp.float32, -bound, bound)
        return w, b

    wqkv, bqkv = lin(ks[0], H, 3 * H)
    wout, bout = lin(ks[1], H, H)
    wff1, bff1 = lin(ks[2], H, 4 * H)
    wff2, bff2 = lin(ks[3], 4 * H, H)
    return dict(
        wqkv=wqkv, bqkv=bqkv, wout=wout, bout=bout,
        wff1=wff1, bff1=bff1, wff2=wff2, bff2=bff2,
        g1=jnp.ones((1, H), jnp.float32), b1=jnp.zeros((1, H), jnp.float32),
        g2=jnp.ones((1, H), jnp.float32), b2=jnp.zeros((1, H), jnp.float32),
    )


def _reference(x, p, num_heads):
    # Pure-JAX f32 reference replicating the PyTorch forward (eval mode),
    # using the ORIGINAL (unpermuted) weight layout.
    B, S, H = x.shape
    hd = H // num_heads
    xn = _layer_norm(x, p["g1"][0], p["b1"][0])
    qkv = xn @ p["wqkv"] + p["bqkv"][0]                          # (B,S,3H)
    qkv = qkv.reshape(B, S, num_heads, 3 * hd).transpose(0, 2, 1, 3)
    q, k, v = qkv[..., :hd], qkv[..., hd:2 * hd], qkv[..., 2 * hd:]
    s = jnp.einsum("bhqd,bhkd->bhqk", q, k) / math.sqrt(hd)
    pmat = jax.nn.softmax(s, axis=-1)
    a = jnp.einsum("bhqk,bhkd->bhqd", pmat, v)
    a = a.transpose(0, 2, 1, 3).reshape(B, S, H)
    x1 = x + (a @ p["wout"] + p["bout"][0])
    xn2 = _layer_norm(x1, p["g2"][0], p["b2"][0])
    ff = jnp.maximum(xn2 @ p["wff1"] + p["bff1"][0], 0.0) @ p["wff2"] + p["bff2"][0]
    return x1 + ff


if __name__ == "__main__":
    B, S, H, NUM_HEADS = 2, 8, 32, 4
    key = jax.random.PRNGKey(0)
    kx, kp = jax.random.split(key)
    x = jax.random.normal(kx, (B, S, H), jnp.float32)
    params = _init_params(kp, H)

    # Fast path: bf16 activations/weights, f32 accumulation (production config).
    out_bf16 = transformer_block_pallas(x, params, NUM_HEADS)
    # Reference-precision path: full f32 compute inside the same kernel structure.
    out_f32 = transformer_block_pallas(x, params, NUM_HEADS, compute_dtype=jnp.float32)
    out_bf16, out_f32 = jax.block_until_ready((out_bf16, out_f32))

    ref = _reference(x, params, NUM_HEADS)
    assert out_bf16.shape == (B, S, H) and out_f32.shape == (B, S, H)
    err_f32 = jnp.max(jnp.abs(out_f32 - ref))
    assert jnp.allclose(out_f32, ref, atol=1e-4, rtol=1e-4), f"f32 max abs err {err_f32}"
    err_bf16 = jnp.max(jnp.abs(out_bf16 - ref))
    # Loose tolerance for the bf16 compute path (still catches structural/layout bugs).
    assert jnp.allclose(out_bf16, ref, atol=1e-1, rtol=1e-1), f"bf16 max abs err {err_bf16}"
    print("KERNEL_OK")
</pallas_src>

<mosaic_0001>
module attributes {stable_mosaic.version = 11 : i64} {
  func.func @_block_kernel(%arg0: i32, %arg1: i32, %arg2: memref<1x8x32xbf16, #tpu.memory_space<vmem>>, %arg3: memref<1x8x32xbf16, #tpu.memory_space<vmem>>, %arg4: memref<32x96xbf16, #tpu.memory_space<vmem>>, %arg5: memref<1x96xf32, #tpu.memory_space<vmem>>, %arg6: memref<4x8x32xbf16, #tpu.memory_space<vmem>>, %arg7: memref<1x32xf32, #tpu.memory_space<vmem>>, %arg8: memref<32x128xbf16, #tpu.memory_space<vmem>>, %arg9: memref<1x128xf32, #tpu.memory_space<vmem>>, %arg10: memref<128x32xbf16, #tpu.memory_space<vmem>>, %arg11: memref<1x32xf32, #tpu.memory_space<vmem>>, %arg12: memref<1x32xf32, #tpu.memory_space<vmem>>, %arg13: memref<1x32xf32, #tpu.memory_space<vmem>>, %arg14: memref<1x32xf32, #tpu.memory_space<vmem>>, %arg15: memref<1x32xf32, #tpu.memory_space<vmem>>, %arg16: memref<1x8x32xf32, #tpu.memory_space<vmem>>, %arg17: memref<4x8x8xbf16, #tpu.memory_space<vmem>>, %arg18: memref<4x8x8xbf16, #tpu.memory_space<vmem>>, %arg19: memref<4x8x8xbf16, #tpu.memory_space<vmem>>) attributes {dimension_semantics = [#tpu.dimension_semantics<parallel>, #tpu.dimension_semantics<arbitrary>], iteration_bounds = array<i64: 2, 1>, scalar_prefetch = 0 : i64, scratch_operands = 3 : i64, tpu.core_type = #tpu.core_type<tc>, window_params = [{transform_indices = @transform_0, window_bounds = array<i64: 1, 8, 32>}, {transform_indices = @transform_1, window_bounds = array<i64: 1, 8, 32>}, {pipeline_mode = #tpu.pipeline_mode<synchronous>, transform_indices = @transform_2, window_bounds = array<i64: 32, 96>}, {pipeline_mode = #tpu.pipeline_mode<synchronous>, transform_indices = @transform_3, window_bounds = array<i64: 1, 96>}, {pipeline_mode = #tpu.pipeline_mode<synchronous>, transform_indices = @transform_4, window_bounds = array<i64: 4, 8, 32>}, {pipeline_mode = #tpu.pipeline_mode<synchronous>, transform_indices = @transform_5, window_bounds = array<i64: 1, 32>}, {pipeline_mode = #tpu.pipeline_mode<synchronous>, transform_indices = @transform_6, window_bounds = array<i64: 32, 128>}, {pipeline_mode = #tpu.pipeline_mode<synchronous>, transform_indices = @transform_7, window_bounds = array<i64: 1, 128>}, {pipeline_mode = #tpu.pipeline_mode<synchronous>, transform_indices = @transform_8, window_bounds = array<i64: 128, 32>}, {pipeline_mode = #tpu.pipeline_mode<synchronous>, transform_indices = @transform_9, window_bounds = array<i64: 1, 32>}, {pipeline_mode = #tpu.pipeline_mode<synchronous>, transform_indices = @transform_10, window_bounds = array<i64: 1, 32>}, {pipeline_mode = #tpu.pipeline_mode<synchronous>, transform_indices = @transform_11, window_bounds = array<i64: 1, 32>}, {pipeline_mode = #tpu.pipeline_mode<synchronous>, transform_indices = @transform_12, window_bounds = array<i64: 1, 32>}, {pipeline_mode = #tpu.pipeline_mode<synchronous>, transform_indices = @transform_13, window_bounds = array<i64: 1, 32>}, {transform_indices = @transform_14, window_bounds = array<i64: 1, 8, 32>}]} {
    %c0_i32 = arith.constant 0 : i32
    %0 = arith.cmpi eq, %arg1, %c0_i32 : i32
    %1 = arith.extui %0 : i1 to i32
    %c0_i32_0 = arith.constant 0 : i32
    %2 = arith.cmpi ne, %1, %c0_i32_0 : i32
    scf.if %2 {
      %c0_46 = arith.constant 0 : index
      %c0_47 = arith.constant 0 : index
      %c0_48 = arith.constant 0 : index
      %74 = vector.load %arg2[%c0_46, %c0_47, %c0_48] : memref<1x8x32xbf16, #tpu.memory_space<vmem>>, vector<1x8x32xbf16>
      %75 = vector.shape_cast %74 : vector<1x8x32xbf16> to vector<8x32xbf16>
      %76 = arith.extf %75 : vector<8x32xbf16> to vector<8x32xf32>
      %c0_49 = arith.constant 0 : index
      %c0_50 = arith.constant 0 : index
      %77 = vector.load %arg12[%c0_49, %c0_50] : memref<1x32xf32, #tpu.memory_space<vmem>>, vector<1x32xf32>
      %c0_51 = arith.constant 0 : index
      %c0_52 = arith.constant 0 : index
      %78 = vector.load %arg13[%c0_51, %c0_52] : memref<1x32xf32, #tpu.memory_space<vmem>>, vector<1x32xf32>
      %cst_53 = arith.constant dense<0.000000e+00> : vector<8xf32>
      %79 = vector.multi_reduction <add>, %76, %cst_53 [1] : vector<8x32xf32> to vector<8xf32>
      %80 = vector.shape_cast %79 : vector<8xf32> to vector<8x1xf32>
      %cst_54 = arith.constant 3.200000e+01 : f32
      %81 = vector.broadcast %cst_54 : f32 to vector<8x1xf32>
      %82 = arith.divf %80, %81 : vector<8x1xf32>
      %83 = vector.broadcast %82 : vector<8x1xf32> to vector<8x32xf32>
      %84 = arith.subf %76, %83 : vector<8x32xf32>
      %85 = arith.mulf %84, %84 : vector<8x32xf32>
      %cst_55 = arith.constant dense<0.000000e+00> : vector<8xf32>
      %86 = vector.multi_reduction <add>, %85, %cst_55 [1] : vector<8x32xf32> to vector<8xf32>
      %87 = vector.shape_cast %86 : vector<8xf32> to vector<8x1xf32>
      %cst_56 = arith.constant 3.200000e+01 : f32
      %88 = vector.broadcast %cst_56 : f32 to vector<8x1xf32>
      %89 = arith.divf %87, %88 : vector<8x1xf32>
      %90 = vector.broadcast %82 : vector<8x1xf32> to vector<8x32xf32>
      %91 = arith.subf %76, %90 : vector<8x32xf32>
      %cst_57 = arith.constant 9.99999974E-6 : f32
      %92 = vector.broadcast %cst_57 : f32 to vector<8x1xf32>
      %93 = arith.addf %89, %92 : vector<8x1xf32>
      %94 = math.rsqrt %93 : vector<8x1xf32>
      %95 = vector.broadcast %94 : vector<8x1xf32> to vector<8x32xf32>
      %96 = arith.mulf %91, %95 : vector<8x32xf32>
      %97 = vector.broadcast %77 : vector<1x32xf32> to vector<8x32xf32>
      %98 = arith.mulf %96, %97 : vector<8x32xf32>
      %99 = vector.broadcast %78 : vector<1x32xf32> to vector<8x32xf32>
      %100 = arith.addf %98, %99 : vector<8x32xf32>
      %101 = arith.truncf %100 : vector<8x32xf32> to vector<8x32xbf16>
      %c0_58 = arith.constant 0 : index
      %c0_59 = arith.constant 0 : index
      %102 = vector.load %arg4[%c0_58, %c0_59] : memref<32x96xbf16, #tpu.memory_space<vmem>>, vector<32x96xbf16>
      %cst_60 = arith.constant dense<0.000000e+00> : vector<8x96xf32>
      %103 = tpu.matmul %101, %102, %cst_60 {dimension_numbers = #tpu.dot_dimension_numbers<[1], [0], [0], [1], [0, 0, 1, 1], [], []>} : vector<8x32xbf16>, vector<32x96xbf16>, vector<8x96xf32> -> vector<8x96xf32>
      %c0_61 = arith.constant 0 : index
      %c0_62 = arith.constant 0 : index
      %104 = vector.load %arg5[%c0_61, %c0_62] : memref<1x96xf32, #tpu.memory_space<vmem>>, vector<1x96xf32>
      %105 = vector.broadcast %104 : vector<1x96xf32> to vector<8x96xf32>
      %106 = arith.addf %103, %105 : vector<8x96xf32>
      %107 = arith.truncf %106 : vector<8x96xf32> to vector<8x96xbf16>
      %108 = vector.extract_strided_slice %107 {offsets = [0, 0], sizes = [8, 8], strides = [1, 1]} : vector<8x96xbf16> to vector<8x8xbf16>
      %c0_63 = arith.constant 0 : index
      %c0_64 = arith.constant 0 : index
      %c0_65 = arith.constant 0 : index
      %109 = vector.load %arg17[%c0_63, %c0_64, %c0_65] : memref<4x8x8xbf16, #tpu.memory_space<vmem>>, vector<1x8x8xbf16>
      %110 = vector.shape_cast %109 : vector<1x8x8xbf16> to vector<8x8xbf16>
      %111 = vector.shape_cast %108 : vector<8x8xbf16> to vector<1x8x8xbf16>
      tpu.vector_store %arg17[%c0_63, %c0_64, %c0_65], %111 {strides = array<i32>} : memref<4x8x8xbf16, #tpu.memory_space<vmem>>, vector<1x8x8xbf16>,
      %112 = vector.extract_strided_slice %107 {offsets = [0, 32], sizes = [8, 8], strides = [1, 1]} : vector<8x96xbf16> to vector<8x8xbf16>
      %c0_66 = arith.constant 0 : index
      %c0_67 = arith.constant 0 : index
      %c0_68 = arith.constant 0 : index
      %113 = vector.load %arg18[%c0_66, %c0_67, %c0_68] : memref<4x8x8xbf16, #tpu.memory_space<vmem>>, vector<1x8x8xbf16>
      %114 = vector.shape_cast %113 : vector<1x8x8xbf16> to vector<8x8xbf16>
      %115 = vector.shape_cast %112 : vector<8x8xbf16> to vector<1x8x8xbf16>
      tpu.vector_store %arg18[%c0_66, %c0_67, %c0_68], %115 {strides = array<i32>} : memref<4x8x8xbf16, #tpu.memory_space<vmem>>, vector<1x8x8xbf16>,
      %116 = vector.extract_strided_slice %107 {offsets = [0, 64], sizes = [8, 8], strides = [1, 1]} : vector<8x96xbf16> to vector<8x8xbf16>
      %c0_69 = arith.constant 0 : index
      %c0_70 = arith.constant 0 : index
      %c0_71 = arith.constant 0 : index
      %117 = vector.load %arg19[%c0_69, %c0_70, %c0_71] : memref<4x8x8xbf16, #tpu.memory_space<vmem>>, vector<1x8x8xbf16>
      %118 = vector.shape_cast %117 : vector<1x8x8xbf16> to vector<8x8xbf16>
      %119 = vector.shape_cast %116 : vector<8x8xbf16> to vector<1x8x8xbf16>
      tpu.vector_store %arg19[%c0_69, %c0_70, %c0_71], %119 {strides = array<i32>} : memref<4x8x8xbf16, #tpu.memory_space<vmem>>, vector<1x8x8xbf16>,
      %120 = vector.extract_strided_slice %107 {offsets = [0, 8], sizes = [8, 8], strides = [1, 1]} : vector<8x96xbf16> to vector<8x8xbf16>
      %c1 = arith.constant 1 : index
      %c0_72 = arith.constant 0 : index
      %c0_73 = arith.constant 0 : index
      %121 = vector.load %arg17[%c1, %c0_72, %c0_73] : memref<4x8x8xbf16, #tpu.memory_space<vmem>>, vector<1x8x8xbf16>
      %122 = vector.shape_cast %121 : vector<1x8x8xbf16> to vector<8x8xbf16>
      %123 = vector.shape_cast %120 : vector<8x8xbf16> to vector<1x8x8xbf16>
      tpu.vector_store %arg17[%c1, %c0_72, %c0_73], %123 {strides = array<i32>} : memref<4x8x8xbf16, #tpu.memory_space<vmem>>, vector<1x8x8xbf16>,
      %124 = vector.extract_strided_slice %107 {offsets = [0, 40], sizes = [8, 8], strides = [1, 1]} : vector<8x96xbf16> to vector<8x8xbf16>
      %c1_74 = arith.constant 1 : index
      %c0_75 = arith.constant 0 : index
      %c0_76 = arith.constant 0 : index
      %125 = vector.load %arg18[%c1_74, %c0_75, %c0_76] : memref<4x8x8xbf16, #tpu.memory_space<vmem>>, vector<1x8x8xbf16>
      %126 = vector.shape_cast %125 : vector<1x8x8xbf16> to vector<8x8xbf16>
      %127 = vector.shape_cast %124 : vector<8x8xbf16> to vector<1x8x8xbf16>
      tpu.vector_store %arg18[%c1_74, %c0_75, %c0_76], %127 {strides = array<i32>} : memref<4x8x8xbf16, #tpu.memory_space<vmem>>, vector<1x8x8xbf16>,
      %128 = vector.extract_strided_slice %107 {offsets = [0, 72], sizes = [8, 8], strides = [1, 1]} : vector<8x96xbf16> to vector<8x8xbf16>
      %c1_77 = arith.constant 1 : index
      %c0_78 = arith.constant 0 : index
      %c0_79 = arith.constant 0 : index
      %129 = vector.load %arg19[%c1_77, %c0_78, %c0_79] : memref<4x8x8xbf16, #tpu.memory_space<vmem>>, vector<1x8x8xbf16>
      %130 = vector.shape_cast %129 : vector<1x8x8xbf16> to vector<8x8xbf16>
      %131 = vector.shape_cast %128 : vector<8x8xbf16> to vector<1x8x8xbf16>
      tpu.vector_store %arg19[%c1_77, %c0_78, %c0_79], %131 {strides = array<i32>} : memref<4x8x8xbf16, #tpu.memory_space<vmem>>, vector<1x8x8xbf16>,
      %132 = vector.extract_strided_slice %107 {offsets = [0, 16], sizes = [8, 8], strides = [1, 1]} : vector<8x96xbf16> to vector<8x8xbf16>
      %c2 = arith.constant 2 : index
      %c0_80 = arith.constant 0 : index
      %c0_81 = arith.constant 0 : index
      %133 = vector.load %arg17[%c2, %c0_80, %c0_81] : memref<4x8x8xbf16, #tpu.memory_space<vmem>>, vector<1x8x8xbf16>
      %134 = vector.shape_cast %133 : vector<1x8x8xbf16> to vector<8x8xbf16>
      %135 = vector.shape_cast %132 : vector<8x8xbf16> to vector<1x8x8xbf16>
      tpu.vector_store %arg17[%c2, %c0_80, %c0_81], %135 {strides = array<i32>} : memref<4x8x8xbf16, #tpu.memory_space<vmem>>, vector<1x8x8xbf16>,
      %136 = vector.extract_strided_slice %107 {offsets = [0, 48], sizes = [8, 8], strides = [1, 1]} : vector<8x96xbf16> to vector<8x8xbf16>
      %c2_82 = arith.constant 2 : index
      %c0_83 = arith.constant 0 : index
      %c0_84 = arith.constant 0 : index
      %137 = vector.load %arg18[%c2_82, %c0_83, %c0_84] : memref<4x8x8xbf16, #tpu.memory_space<vmem>>, vector<1x8x8xbf16>
      %138 = vector.shape_cast %137 : vector<1x8x8xbf16> to vector<8x8xbf16>
      %139 = vector.shape_cast %136 : vector<8x8xbf16> to vector<1x8x8xbf16>
      tpu.vector_store %arg18[%c2_82, %c0_83, %c0_84], %139 {strides = array<i32>} : memref<4x8x8xbf16, #tpu.memory_space<vmem>>, vector<1x8x8xbf16>,
      %140 = vector.extract_strided_slice %107 {offsets = [0, 80], sizes = [8, 8], strides = [1, 1]} : vector<8x96xbf16> to vector<8x8xbf16>
      %c2_85 = arith.constant 2 : index
      %c0_86 = arith.constant 0 : index
      %c0_87 = arith.constant 0 : index
      %141 = vector.load %arg19[%c2_85, %c0_86, %c0_87] : memref<4x8x8xbf16, #tpu.memory_space<vmem>>, vector<1x8x8xbf16>
      %142 = vector.shape_cast %141 : vector<1x8x8xbf16> to vector<8x8xbf16>
      %143 = vector.shape_cast %140 : vector<8x8xbf16> to vector<1x8x8xbf16>
      tpu.vector_store %arg19[%c2_85, %c0_86, %c0_87], %143 {strides = array<i32>} : memref<4x8x8xbf16, #tpu.memory_space<vmem>>, vector<1x8x8xbf16>,
      %144 = vector.extract_strided_slice %107 {offsets = [0, 24], sizes = [8, 8], strides = [1, 1]} : vector<8x96xbf16> to vector<8x8xbf16>
      %c3 = arith.constant 3 : index
      %c0_88 = arith.constant 0 : index
      %c0_89 = arith.constant 0 : index
      %145 = vector.load %arg17[%c3, %c0_88, %c0_89] : memref<4x8x8xbf16, #tpu.memory_space<vmem>>, vector<1x8x8xbf16>
      %146 = vector.shape_cast %145 : vector<1x8x8xbf16> to vector<8x8xbf16>
      %147 = vector.shape_cast %144 : vector<8x8xbf16> to vector<1x8x8xbf16>
      tpu.vector_store %arg17[%c3, %c0_88, %c0_89], %147 {strides = array<i32>} : memref<4x8x8xbf16, #tpu.memory_space<vmem>>, vector<1x8x8xbf16>,
      %148 = vector.extract_strided_slice %107 {offsets = [0, 56], sizes = [8, 8], strides = [1, 1]} : vector<8x96xbf16> to vector<8x8xbf16>
      %c3_90 = arith.constant 3 : index
      %c0_91 = arith.constant 0 : index
      %c0_92 = arith.constant 0 : index
      %149 = vector.load %arg18[%c3_90, %c0_91, %c0_92] : memref<4x8x8xbf16, #tpu.memory_space<vmem>>, vector<1x8x8xbf16>
      %150 = vector.shape_cast %149 : vector<1x8x8xbf16> to vector<8x8xbf16>
      %151 = vector.shape_cast %148 : vector<8x8xbf16> to vector<1x8x8xbf16>
      tpu.vector_store %arg18[%c3_90, %c0_91, %c0_92], %151 {strides = array<i32>} : memref<4x8x8xbf16, #tpu.memory_space<vmem>>, vector<1x8x8xbf16>,
      %152 = vector.extract_strided_slice %107 {offsets = [0, 88], sizes = [8, 8], strides = [1, 1]} : vector<8x96xbf16> to vector<8x8xbf16>
      %c3_93 = arith.constant 3 : index
      %c0_94 = arith.constant 0 : index
      %c0_95 = arith.constant 0 : index
      %153 = vector.load %arg19[%c3_93, %c0_94, %c0_95] : memref<4x8x8xbf16, #tpu.memory_space<vmem>>, vector<1x8x8xbf16>
      %154 = vector.shape_cast %153 : vector<1x8x8xbf16> to vector<8x8xbf16>
      %155 = vector.shape_cast %152 : vector<8x8xbf16> to vector<1x8x8xbf16>
      tpu.vector_store %arg19[%c3_93, %c0_94, %c0_95], %155 {strides = array<i32>} : memref<4x8x8xbf16, #tpu.memory_space<vmem>>, vector<1x8x8xbf16>,
    } else {
    }
    %c0 = arith.constant 0 : index
    %c0_1 = arith.constant 0 : index
    %c0_2 = arith.constant 0 : index
    %3 = vector.load %arg17[%c0, %c0_1, %c0_2] : memref<4x8x8xbf16, #tpu.memory_space<vmem>>, vector<4x8x8xbf16>
    %c0_3 = arith.constant 0 : index
    %c0_4 = arith.constant 0 : index
    %c0_5 = arith.constant 0 : index
    %4 = vector.load %arg18[%c0_3, %c0_4, %c0_5] : memref<4x8x8xbf16, #tpu.memory_space<vmem>>, vector<4x8x8xbf16>
    %c0_6 = arith.constant 0 : index
    %c0_7 = arith.constant 0 : index
    %c0_8 = arith.constant 0 : index
    %5 = vector.load %arg19[%c0_6, %c0_7, %c0_8] : memref<4x8x8xbf16, #tpu.memory_space<vmem>>, vector<4x8x8xbf16>
    "tpu.trace_start"() <{level = 10 : i32, message = "hqd,hkd->hqk"}> : () -> ()
    %cst = arith.constant dense<0.000000e+00> : vector<4x8x8xf32>
    %6 = tpu.matmul %3, %4, %cst {dimension_numbers = #tpu.dot_dimension_numbers<[2], [2], [1], [1], [0, 0, 0, 1, 1, 1], [0], [0]>} : vector<4x8x8xbf16>, vector<4x8x8xbf16>, vector<4x8x8xf32> -> vector<4x8x8xf32>
    "tpu.trace_stop"() : () -> ()
    %cst_9 = arith.constant 0.353553385 : f32
    %7 = vector.broadcast %cst_9 : f32 to vector<4x8x8xf32>
    %8 = arith.mulf %6, %7 : vector<4x8x8xf32>
    %cst_10 = arith.constant dense<0xFF800000> : vector<4x8xf32>
    %9 = vector.multi_reduction <maximumf>, %8, %cst_10 [2] : vector<4x8x8xf32> to vector<4x8xf32>
    %10 = vector.shape_cast %9 : vector<4x8xf32> to vector<4x8x1xf32>
    %11 = vector.broadcast %10 : vector<4x8x1xf32> to vector<4x8x8xf32>
    %12 = arith.subf %8, %11 : vector<4x8x8xf32>
    %13 = math.exp %12 : vector<4x8x8xf32>
    %cst_11 = arith.constant dense<0.000000e+00> : vector<4x8xf32>
    %14 = vector.multi_reduction <add>, %13, %cst_11 [2] : vector<4x8x8xf32> to vector<4x8xf32>
    %15 = vector.shape_cast %14 : vector<4x8xf32> to vector<4x8x1xf32>
    %16 = tpu.reciprocal %15 {approx = true} : vector<4x8x1xf32> -> vector<4x8x1xf32>
    %17 = vector.broadcast %16 : vector<4x8x1xf32> to vector<4x8x8xf32>
    %18 = arith.mulf %13, %17 : vector<4x8x8xf32>
    %19 = arith.truncf %18 : vector<4x8x8xf32> to vector<4x8x8xbf16>
    "tpu.trace_start"() <{level = 10 : i32, message = "hqk,hkd->hqd"}> : () -> ()
    %cst_12 = arith.constant dense<0.000000e+00> : vector<4x8x8xf32>
    %20 = tpu.matmul %19, %5, %cst_12 {dimension_numbers = #tpu.dot_dimension_numbers<[2], [1], [1], [2], [0, 0, 0, 1, 1, 2], [0], [0]>} : vector<4x8x8xbf16>, vector<4x8x8xbf16>, vector<4x8x8xf32> -> vector<4x8x8xf32>
    "tpu.trace_stop"() : () -> ()
    %21 = arith.truncf %20 : vector<4x8x8xf32> to vector<4x8x8xbf16>
    %c0_13 = arith.constant 0 : index
    %c0_14 = arith.constant 0 : index
    %c0_15 = arith.constant 0 : index
    %22 = vector.load %arg6[%c0_13, %c0_14, %c0_15] : memref<4x8x32xbf16, #tpu.memory_space<vmem>>, vector<4x8x32xbf16>
    "tpu.trace_start"() <{level = 10 : i32, message = "hqd,hdo->hqo"}> : () -> ()
    %cst_16 = arith.constant dense<0.000000e+00> : vector<4x8x32xf32>
    %23 = tpu.matmul %21, %22, %cst_16 {dimension_numbers = #tpu.dot_dimension_numbers<[2], [1], [1], [2], [0, 0, 0, 1, 1, 2], [0], [0]>} : vector<4x8x8xbf16>, vector<4x8x32xbf16>, vector<4x8x32xf32> -> vector<4x8x32xf32>
    "tpu.trace_stop"() : () -> ()
    %cst_17 = arith.constant dense<0.000000e+00> : vector<8x32xf32>
    %24 = vector.multi_reduction <add>, %23, %cst_17 [0] : vector<4x8x32xf32> to vector<8x32xf32>
    %c0_18 = arith.constant 0 : index
    %c0_19 = arith.constant 0 : index
    %25 = vector.load %arg7[%c0_18, %c0_19] : memref<1x32xf32, #tpu.memory_space<vmem>>, vector<1x32xf32>
    %26 = vector.broadcast %25 : vector<1x32xf32> to vector<8x32xf32>
    %27 = arith.addf %24, %26 : vector<8x32xf32>
    %c0_20 = arith.constant 0 : index
    %c0_21 = arith.constant 0 : index
    %c0_22 = arith.constant 0 : index
    %28 = vector.load %arg3[%c0_20, %c0_21, %c0_22] : memref<1x8x32xbf16, #tpu.memory_space<vmem>>, vector<1x8x32xbf16>
    %29 = vector.shape_cast %28 : vector<1x8x32xbf16> to vector<8x32xbf16>
    %30 = arith.extf %29 : vector<8x32xbf16> to vector<8x32xf32>
    %31 = arith.addf %30, %27 : vector<8x32xf32>
    %c0_23 = arith.constant 0 : index
    %c0_24 = arith.constant 0 : index
    %32 = vector.load %arg14[%c0_23, %c0_24] : memref<1x32xf32, #tpu.memory_space<vmem>>, vector<1x32xf32>
    %c0_25 = arith.constant 0 : index
    %c0_26 = arith.constant 0 : index
    %33 = vector.load %arg15[%c0_25, %c0_26] : memref<1x32xf32, #tpu.memory_space<vmem>>, vector<1x32xf32>
    %cst_27 = arith.constant dense<0.000000e+00> : vector<8xf32>
    %34 = vector.multi_reduction <add>, %31, %cst_27 [1] : vector<8x32xf32> to vector<8xf32>
    %35 = vector.shape_cast %34 : vector<8xf32> to vector<8x1xf32>
    %cst_28 = arith.constant 3.200000e+01 : f32
    %36 = vector.broadcast %cst_28 : f32 to vector<8x1xf32>
    %37 = arith.divf %35, %36 : vector<8x1xf32>
    %38 = vector.broadcast %37 : vector<8x1xf32> to vector<8x32xf32>
    %39 = arith.subf %31, %38 : vector<8x32xf32>
    %40 = arith.mulf %39, %39 : vector<8x32xf32>
    %cst_29 = arith.constant dense<0.000000e+00> : vector<8xf32>
    %41 = vector.multi_reduction <add>, %40, %cst_29 [1] : vector<8x32xf32> to vector<8xf32>
    %42 = vector.shape_cast %41 : vector<8xf32> to vector<8x1xf32>
    %cst_30 = arith.constant 3.200000e+01 : f32
    %43 = vector.broadcast %cst_30 : f32 to vector<8x1xf32>
    %44 = arith.divf %42, %43 : vector<8x1xf32>
    %45 = vector.broadcast %37 : vector<8x1xf32> to vector<8x32xf32>
    %46 = arith.subf %31, %45 : vector<8x32xf32>
    %cst_31 = arith.constant 9.99999974E-6 : f32
    %47 = vector.broadcast %cst_31 : f32 to vector<8x1xf32>
    %48 = arith.addf %44, %47 : vector<8x1xf32>
    %49 = math.rsqrt %48 : vector<8x1xf32>
    %50 = vector.broadcast %49 : vector<8x1xf32> to vector<8x32xf32>
    %51 = arith.mulf %46, %50 : vector<8x32xf32>
    %52 = vector.broadcast %32 : vector<1x32xf32> to vector<8x32xf32>
    %53 = arith.mulf %51, %52 : vector<8x32xf32>
    %54 = vector.broadcast %33 : vector<1x32xf32> to vector<8x32xf32>
    %55 = arith.addf %53, %54 : vector<8x32xf32>
    %56 = arith.truncf %55 : vector<8x32xf32> to vector<8x32xbf16>
    %c0_32 = arith.constant 0 : index
    %c0_33 = arith.constant 0 : index
    %57 = vector.load %arg8[%c0_32, %c0_33] : memref<32x128xbf16, #tpu.memory_space<vmem>>, vector<32x128xbf16>
    %cst_34 = arith.constant dense<0.000000e+00> : vector<8x128xf32>
    %58 = tpu.matmul %56, %57, %cst_34 {dimension_numbers = #tpu.dot_dimension_numbers<[1], [0], [0], [1], [0, 0, 1, 1], [], []>} : vector<8x32xbf16>, vector<32x128xbf16>, vector<8x128xf32> -> vector<8x128xf32>
    %c0_35 = arith.constant 0 : index
    %c0_36 = arith.constant 0 : index
    %59 = vector.load %arg9[%c0_35, %c0_36] : memref<1x128xf32, #tpu.memory_space<vmem>>, vector<1x128xf32>
    %60 = vector.broadcast %59 : vector<1x128xf32> to vector<8x128xf32>
    %61 = arith.addf %58, %60 : vector<8x128xf32>
    %cst_37 = arith.constant 0.000000e+00 : f32
    %62 = vector.broadcast %cst_37 : f32 to vector<8x128xf32>
    %63 = arith.maximumf %61, %62 : vector<8x128xf32>
    %64 = arith.truncf %63 : vector<8x128xf32> to vector<8x128xbf16>
    %c0_38 = arith.constant 0 : index
    %c0_39 = arith.constant 0 : index
    %65 = vector.load %arg10[%c0_38, %c0_39] : memref<128x32xbf16, #tpu.memory_space<vmem>>, vector<128x32xbf16>
    %cst_40 = arith.constant dense<0.000000e+00> : vector<8x32xf32>
    %66 = tpu.matmul %64, %65, %cst_40 {dimension_numbers = #tpu.dot_dimension_numbers<[1], [0], [0], [1], [0, 0, 1, 1], [], []>} : vector<8x128xbf16>, vector<128x32xbf16>, vector<8x32xf32> -> vector<8x32xf32>
    %c0_41 = arith.constant 0 : index
    %c0_42 = arith.constant 0 : index
    %67 = vector.load %arg11[%c0_41, %c0_42] : memref<1x32xf32, #tpu.memory_space<vmem>>, vector<1x32xf32>
    %68 = vector.broadcast %67 : vector<1x32xf32> to vector<8x32xf32>
    %69 = arith.addf %66, %68 : vector<8x32xf32>
    %70 = arith.addf %31, %69 : vector<8x32xf32>
    %c0_43 = arith.constant 0 : index
    %c0_44 = arith.constant 0 : index
    %c0_45 = arith.constant 0 : index
    %71 = vector.load %arg16[%c0_43, %c0_44, %c0_45] : memref<1x8x32xf32, #tpu.memory_space<vmem>>, vector<1x8x32xf32>
    %72 = vector.shape_cast %71 : vector<1x8x32xf32> to vector<8x32xf32>
    %73 = vector.shape_cast %70 : vector<8x32xf32> to vector<1x8x32xf32>
    tpu.vector_store %arg16[%c0_43, %c0_44, %c0_45], %73 {strides = array<i32>} : memref<1x8x32xf32, #tpu.memory_space<vmem>>, vector<1x8x32xf32>,
    return
  }
  func.func @transform_0(%arg0: i32, %arg1: i32) -> (i32, i32, i32) {
    %c0_i32 = arith.constant 0 : i32
    %c0_i32_0 = arith.constant 0 : i32
    %c0_i32_1 = arith.constant 0 : i32
    return %arg0, %c0_i32, %c0_i32_0 : i32, i32, i32
  }
  func.func @transform_1(%arg0: i32, %arg1: i32) -> (i32, i32, i32) {
    %c0_i32 = arith.constant 0 : i32
    %c0_i32_0 = arith.constant 0 : i32
    return %arg0, %arg1, %c0_i32 : i32, i32, i32
  }
  func.func @transform_2(%arg0: i32, %arg1: i32) -> (i32, i32) {
    %c0_i32 = arith.constant 0 : i32
    %c0_i32_0 = arith.constant 0 : i32
    %c0_i32_1 = arith.constant 0 : i32
    return %c0_i32, %c0_i32_0 : i32, i32
  }
  func.func @transform_3(%arg0: i32, %arg1: i32) -> (i32, i32) {
    %c0_i32 = arith.constant 0 : i32
    %c0_i32_0 = arith.constant 0 : i32
    %c0_i32_1 = arith.constant 0 : i32
    return %c0_i32, %c0_i32_0 : i32, i32
  }
  func.func @transform_4(%arg0: i32, %arg1: i32) -> (i32, i32, i32) {
    %c0_i32 = arith.constant 0 : i32
    %c0_i32_0 = arith.constant 0 : i32
    %c0_i32_1 = arith.constant 0 : i32
    %c0_i32_2 = arith.constant 0 : i32
    return %c0_i32, %c0_i32_0, %c0_i32_1 : i32, i32, i32
  }
  func.func @transform_5(%arg0: i32, %arg1: i32) -> (i32, i32) {
    %c0_i32 = arith.constant 0 : i32
    %c0_i32_0 = arith.constant 0 : i32
    %c0_i32_1 = arith.constant 0 : i32
    return %c0_i32, %c0_i32_0 : i32, i32
  }
  func.func @transform_6(%arg0: i32, %arg1: i32) -> (i32, i32) {
    %c0_i32 = arith.constant 0 : i32
    %c0_i32_0 = arith.constant 0 : i32
    %c0_i32_1 = arith.constant 0 : i32
    return %c0_i32, %c0_i32_0 : i32, i32
  }
  func.func @transform_7(%arg0: i32, %arg1: i32) -> (i32, i32) {
    %c0_i32 = arith.constant 0 : i32
    %c0_i32_0 = arith.constant 0 : i32
    %c0_i32_1 = arith.constant 0 : i32
    return %c0_i32, %c0_i32_0 : i32, i32
  }
  func.func @transform_8(%arg0: i32, %arg1: i32) -> (i32, i32) {
    %c0_i32 = arith.constant 0 : i32
    %c0_i32_0 = arith.constant 0 : i32
    %c0_i32_1 = arith.constant 0 : i32
    return %c0_i32, %c0_i32_0 : i32, i32
  }
  func.func @transform_9(%arg0: i32, %arg1: i32) -> (i32, i32) {
    %c0_i32 = arith.constant 0 : i32
    %c0_i32_0 = arith.constant 0 : i32
    %c0_i32_1 = arith.constant 0 : i32
    return %c0_i32, %c0_i32_0 : i32, i32
  }
  func.func @transform_10(%arg0: i32, %arg1: i32) -> (i32, i32) {
    %c0_i32 = arith.constant 0 : i32
    %c0_i32_0 = arith.constant 0 : i32
    %c0_i32_1 = arith.constant 0 : i32
    return %c0_i32, %c0_i32_0 : i32, i32
  }
  func.func @transform_11(%arg0: i32, %arg1: i32) -> (i32, i32) {
    %c0_i32 = arith.constant 0 : i32
    %c0_i32_0 = arith.constant 0 : i32
    %c0_i32_1 = arith.constant 0 : i32
    return %c0_i32, %c0_i32_0 : i32, i32
  }
  func.func @transform_12(%arg0: i32, %arg1: i32) -> (i32, i32) {
    %c0_i32 = arith.constant 0 : i32
    %c0_i32_0 = arith.constant 0 : i32
    %c0_i32_1 = arith.constant 0 : i32
    return %c0_i32, %c0_i32_0 : i32, i32
  }
  func.func @transform_13(%arg0: i32, %arg1: i32) -> (i32, i32) {
    %c0_i32 = arith.constant 0 : i32
    %c0_i32_0 = arith.constant 0 : i32
    %c0_i32_1 = arith.constant 0 : i32
    return %c0_i32, %c0_i32_0 : i32, i32
  }
  func.func @transform_14(%arg0: i32, %arg1: i32) -> (i32, i32, i32) {
    %c0_i32 = arith.constant 0 : i32
    %c0_i32_0 = arith.constant 0 : i32
    return %arg0, %arg1, %c0_i32 : i32, i32, i32
  }
}

</mosaic_0001>

<llo_original>
// kernel: tpu_custom_call.1
$region0: #{tpu_custom_call.1}
  #allocation0 [shape = 'u32[]', space=smem, size = 0x4, offset = 0x4, fixed_abs, tag = 'smem constant byte address 0x4 - core index']
  #allocation1 [shape = 'u32[72,128]{1,0:T(1,128)}', space=vmem, size = 0x9000, scoped, tag = 'internal scratch']
  #allocation2 [shape = 'bf16[4,8,8]{2,1,0:T(8,128)(2,1)}', space=vmem, size = 0x2000, scoped, tag = 'scratch operand']
  #allocation3 [shape = 'bf16[4,8,8]{2,1,0:T(8,128)(2,1)}', space=vmem, size = 0x2000, scoped, tag = 'scratch operand']
  #allocation4 [shape = 'bf16[4,8,8]{2,1,0:T(8,128)(2,1)}', space=vmem, size = 0x2000, scoped, tag = 'scratch operand']
  %s0 = inlined_call_operand.vmem [shape: bf16[2,8,32], index: 0, kind: input, shape index: {}]
  %s1 = inlined_call_operand.vmem [shape: bf16[2,8,32], index: 1, kind: input, shape index: {}]
  %s2 = inlined_call_operand.vmem [shape: bf16[32,96], index: 2, kind: input, shape index: {}]
  %s3 = inlined_call_operand.vmem [shape: f32[1,96], index: 3, kind: input, shape index: {}]
  %s4 = inlined_call_operand.vmem [shape: bf16[4,8,32], index: 4, kind: input, shape index: {}]
  %s5 = inlined_call_operand.vmem [shape: f32[1,32], index: 5, kind: input, shape index: {}]
  %s6 = inlined_call_operand.vmem [shape: bf16[32,128], index: 6, kind: input, shape index: {}]
  %s7 = inlined_call_operand.vmem [shape: f32[1,128], index: 7, kind: input, shape index: {}]
  %s8 = inlined_call_operand.vmem [shape: bf16[128,32], index: 8, kind: input, shape index: {}]
  %s9 = inlined_call_operand.vmem [shape: f32[1,32], index: 9, kind: input, shape index: {}]
  %s10 = inlined_call_operand.vmem [shape: f32[1,32], index: 10, kind: input, shape index: {}]
  %s11 = inlined_call_operand.vmem [shape: f32[1,32], index: 11, kind: input, shape index: {}]
  %s12 = inlined_call_operand.vmem [shape: f32[1,32], index: 12, kind: input, shape index: {}]
  %s13 = inlined_call_operand.vmem [shape: f32[1,32], index: 13, kind: input, shape index: {}]
  %s14 = inlined_call_operand.hbm [shape: f32[2,8,32], index: 14, kind: output, shape index: {}]
  %s15 = sld [smem:[#allocation0]]
  $region93: #{tpu_custom_call.1} parent=0
    _
  %s17 = ssub.s32 1, %s15
  %s18 = scalar_select 0, %s17, %s15
  $region1: #{tpu_custom_call.1} parent=0
    #allocation5 [shape = 'u8[8192]{0}', space=vmem, size = 0x2000, scoped, tag = 'output window, operand 0']
    #allocation6 [shape = 's32[2]{0}', space=sflag, size = 0x8, scoped, tag = 'scoped memory for tpu_custom_call.1']
    %19 = vsyncpa [#allocation6], 0
    %s20 = scalar_lea.sflag [#allocation6], 1
    %21 = vsyncpa %s20, 0
    loop: start=0, step=1, limit=4
    $region2: #{tpu_custom_call.1} parent=1 // loop_pre_header
      _
    $region3: #{tpu_custom_call.1} parent=1 // loop_header
      %s23 = sphi 0, %s27
      %p24 = scmp.ge.s32.totalorder %s23, 4
      %s30 = sphi 0, %s42
      %s31 = sphi 0, %s38
      %s32 = sphi 0, %s30
      %s33 = sphi 0, %s31
      %s34 = sphi 0, %s32
      %s35 = sphi 0, %s33
      %s45 = sphi 0, %s47
      %s48 = sphi 0, %s45
      %s49 = sphi 0, %s48
      %s65 = sphi 0, %s49
      %s73 = sphi 0, %s75
      %s76 = sphi 0, %s73
      %s77 = sphi 0, %s76
      %s93 = sphi 0, %s77
      %s97 = sphi 0, %s97
      %s99 = sphi 0, %s97
      %s100 = sphi 0, %s99
      %s114 = sphi 0, %s100
      %s118 = sphi 0, %s118
      %s120 = sphi 0, %s118
      %s121 = sphi 0, %s120
      %s135 = sphi 0, %s121
      %s139 = sphi 0, %s139
      %s141 = sphi 0, %s139
      %s142 = sphi 0, %s141
      %s156 = sphi 0, %s142
      %s160 = sphi 0, %s160
      %s162 = sphi 0, %s160
      %s163 = sphi 0, %s162
      %s177 = sphi 0, %s163
      %s181 = sphi 0, %s181
      %s183 = sphi 0, %s181
      %s184 = sphi 0, %s183
      %s198 = sphi 0, %s184
      %s202 = sphi 0, %s202
      %s204 = sphi 0, %s202
      %s205 = sphi 0, %s204
      %s219 = sphi 0, %s205
      %s223 = sphi 0, %s223
      %s225 = sphi 0, %s223
      %s226 = sphi 0, %s225
      %s240 = sphi 0, %s226
      %s244 = sphi 0, %s244
      %s246 = sphi 0, %s244
      %s247 = sphi 0, %s246
      %s261 = sphi 0, %s247
      %s265 = sphi 0, %s265
      %s267 = sphi 0, %s265
      %s268 = sphi 0, %s267
      %s282 = sphi 0, %s268
      %s286 = sphi 0, %s286
      %s288 = sphi 0, %s286
      %s289 = sphi 0, %s288
      %s303 = sphi 0, %s289
      %s307 = sphi 0, %s307
      %s309 = sphi 0, %s307
      %s310 = sphi 0, %s309
      %s324 = sphi 0, %s310
      %s328 = sphi 0, %s328
      %s330 = sphi 0, %s328
      %s331 = sphi 0, %s330
      %s345 = sphi 0, %s331
      %s353 = sphi 0, %s355
      %s356 = sphi 0, %s353
      %s357 = sphi 0, %s356
      %s373 = sphi 0, %s357
    $region4: #{tpu_custom_call.1} parent=1 // loop_header_branch
      %26 = sbr.rel (%p24) target = $region8
    $region5: #{tpu_custom_call.1} parent=1 // loop_body
      %s28 = ssub.s32 %s23, 1
      %s29 = ssub.s32 %s23, 2
      %s36 = sadd.s32 1, %s31
      %p37 = scmp.ge.s32.totalorder %s36, 1
      %s38 = scalar_select %p37, 0, %s36
      %s39 = sadd.s32 1, %s30
      %s40 = scalar_select %p37, %s39, %s30
      %p41 = scmp.ge.s32.totalorder %s40, 2
      %s42 = scalar_select %p41, 0, %s40
      %s43 = ssub.s32 %s30, %s42
      %p44 = scmp.eq.s32.totalorder %s43, 0
      %s46 = sadd.s32 %s45, 1
      %s47 = scalar_select %p44, %s45, %s46
      %p50 = pneg %p44
      %p51 = scmp.eq.s32.totalorder %s23, 1
      %p52 = por %p50, %p51
      %p53 = scmp.ne.s32.totalorder %s45, %s48
      %p54 = scmp.eq.s32.totalorder %s23, 0
      %p55 = por %p53, %p54
      %p56 = scmp.ne.s32.totalorder %s45, %s48
      %p57 = scmp.eq.s32.totalorder %s28, 1
      %p58 = por %p56, %p57
      %p59 = scmp.ne.s32.totalorder %s48, %s49
      %p60 = scmp.eq.s32.totalorder %s28, 0
      %p61 = por %p59, %p60
      %p62 = scmp.ne.s32.totalorder %s48, %s49
      %p63 = scmp.eq.s32.totalorder %s29, 1
      %p64 = por %p62, %p63
      %p66 = scmp.ne.s32.totalorder %s49, %s65
      %p67 = scmp.eq.s32.totalorder %s29, 0
      %p68 = por %p66, %p67
      %s69 = ssub.s32 %s30, %s42
      %s70 = ssub.s32 %s31, %s38
      %s71 = sor.u32 %s69, %s70
      %p72 = scmp.eq.s32.totalorder %s71, 0
      %s74 = sadd.s32 %s73, 1
      %s75 = scalar_select %p72, %s73, %s74
      %p78 = pneg %p72
      %p79 = scmp.eq.s32.totalorder %s23, 1
      %p80 = por %p78, %p79
      %p81 = scmp.ne.s32.totalorder %s73, %s76
      %p82 = scmp.eq.s32.totalorder %s23, 0
      %p83 = por %p81, %p82
      %p84 = scmp.ne.s32.totalorder %s73, %s76
      %p85 = scmp.eq.s32.totalorder %s28, 1
      %p86 = por %p84, %p85
      %p87 = scmp.ne.s32.totalorder %s76, %s77
      %p88 = scmp.eq.s32.totalorder %s28, 0
      %p89 = por %p87, %p88
      %p90 = scmp.ne.s32.totalorder %s76, %s77
      %p91 = scmp.eq.s32.totalorder %s29, 1
      %p92 = por %p90, %p91
      %p94 = scmp.ne.s32.totalorder %s77, %s93
      %p95 = scmp.eq.s32.totalorder %s29, 0
      %p96 = por %p94, %p95
      %s98 = sadd.s32 %s97, 1
      %p101 = scmp.eq.s32.totalorder %s23, 1
      %p102 = scmp.ne.s32.totalorder %s97, %s99
      %p103 = scmp.eq.s32.totalorder %s23, 0
      %p104 = por %p102, %p103
      %p105 = scmp.ne.s32.totalorder %s97, %s99
      %p106 = scmp.eq.s32.totalorder %s28, 1
      %p107 = por %p105, %p106
      %p108 = scmp.ne.s32.totalorder %s99, %s100
      %p109 = scmp.eq.s32.totalorder %s28, 0
      %p110 = por %p108, %p109
      %p111 = scmp.ne.s32.totalorder %s99, %s100
      %p112 = scmp.eq.s32.totalorder %s29, 1
      %p113 = por %p111, %p112
      %p115 = scmp.ne.s32.totalorder %s100, %s114
      %p116 = scmp.eq.s32.totalorder %s29, 0
      %p117 = por %p115, %p116
      %s119 = sadd.s32 %s118, 1
      %p122 = scmp.eq.s32.totalorder %s23, 1
      %p123 = scmp.ne.s32.totalorder %s118, %s120
      %p124 = scmp.eq.s32.totalorder %s23, 0
      %p125 = por %p123, %p124
      %p126 = scmp.ne.s32.totalorder %s118, %s120
      %p127 = scmp.eq.s32.totalorder %s28, 1
      %p128 = por %p126, %p127
      %p129 = scmp.ne.s32.totalorder %s120, %s121
      %p130 = scmp.eq.s32.totalorder %s28, 0
      %p131 = por %p129, %p130
      %p132 = scmp.ne.s32.totalorder %s120, %s121
      %p133 = scmp.eq.s32.totalorder %s29, 1
      %p134 = por %p132, %p133
      %p136 = scmp.ne.s32.totalorder %s121, %s135
      %p137 = scmp.eq.s32.totalorder %s29, 0
      %p138 = por %p136, %p137
      %s140 = sadd.s32 %s139, 1
      %p143 = scmp.eq.s32.totalorder %s23, 1
      %p144 = scmp.ne.s32.totalorder %s139, %s141
      %p145 = scmp.eq.s32.totalorder %s23, 0
      %p146 = por %p144, %p145
      %p147 = scmp.ne.s32.totalorder %s139, %s141
      %p148 = scmp.eq.s32.totalorder %s28, 1
      %p149 = por %p147, %p148
      %p150 = scmp.ne.s32.totalorder %s141, %s142
      %p151 = scmp.eq.s32.totalorder %s28, 0
      %p152 = por %p150, %p151
      %p153 = scmp.ne.s32.totalorder %s141, %s142
      %p154 = scmp.eq.s32.totalorder %s29, 1
      %p155 = por %p153, %p154
      %p157 = scmp.ne.s32.totalorder %s142, %s156
      %p158 = scmp.eq.s32.totalorder %s29, 0
      %p159 = por %p157, %p158
      %s161 = sadd.s32 %s160, 1
      %p164 = scmp.eq.s32.totalorder %s23, 1
      %p165 = scmp.ne.s32.totalorder %s160, %s162
      %p166 = scmp.eq.s32.totalorder %s23, 0
      %p167 = por %p165, %p166
      %p168 = scmp.ne.s32.totalorder %s160, %s162
      %p169 = scmp.eq.s32.totalorder %s28, 1
      %p170 = por %p168, %p169
      %p171 = scmp.ne.s32.totalorder %s162, %s163
      %p172 = scmp.eq.s32.totalorder %s28, 0
      %p173 = por %p171, %p172
      %p174 = scmp.ne.s32.totalorder %s162, %s163
      %p175 = scmp.eq.s32.totalorder %s29, 1
      %p176 = por %p174, %p175
      %p178 = scmp.ne.s32.totalorder %s163, %s177
      %p179 = scmp.eq.s32.totalorder %s29, 0
      %p180 = por %p178, %p179
      %s182 = sadd.s32 %s181, 1
      %p185 = scmp.eq.s32.totalorder %s23, 1
      %p186 = scmp.ne.s32.totalorder %s181, %s183
      %p187 = scmp.eq.s32.totalorder %s23, 0
      %p188 = por %p186, %p187
      %p189 = scmp.ne.s32.totalorder %s181, %s183
      %p190 = scmp.eq.s32.totalorder %s28, 1
      %p191 = por %p189, %p190
      %p192 = scmp.ne.s32.totalorder %s183, %s184
      %p193 = scmp.eq.s32.totalorder %s28, 0
      %p194 = por %p192, %p193
      %p195 = scmp.ne.s32.totalorder %s183, %s184
      %p196 = scmp.eq.s32.totalorder %s29, 1
      %p197 = por %p195, %p196
      %p199 = scmp.ne.s32.totalorder %s184, %s198
      %p200 = scmp.eq.s32.totalorder %s29, 0
      %p201 = por %p199, %p200
      %s203 = sadd.s32 %s202, 1
      %p206 = scmp.eq.s32.totalorder %s23, 1
      %p207 = scmp.ne.s32.totalorder %s202, %s204
      %p208 = scmp.eq.s32.totalorder %s23, 0
      %p209 = por %p207, %p208
      %p210 = scmp.ne.s32.totalorder %s202, %s204
      %p211 = scmp.eq.s32.totalorder %s28, 1
      %p212 = por %p210, %p211
      %p213 = scmp.ne.s32.totalorder %s204, %s205
      %p214 = scmp.eq.s32.totalorder %s28, 0
      %p215 = por %p213, %p214
      %p216 = scmp.ne.s32.totalorder %s204, %s205
      %p217 = scmp.eq.s32.totalorder %s29, 1
      %p218 = por %p216, %p217
      %p220 = scmp.ne.s32.totalorder %s205, %s219
      %p221 = scmp.eq.s32.totalorder %s29, 0
      %p222 = por %p220, %p221
      %s224 = sadd.s32 %s223, 1
      %p227 = scmp.eq.s32.totalorder %s23, 1
      %p228 = scmp.ne.s32.totalorder %s223, %s225
      %p229 = scmp.eq.s32.totalorder %s23, 0
      %p230 = por %p228, %p229
      %p231 = scmp.ne.s32.totalorder %s223, %s225
      %p232 = scmp.eq.s32.totalorder %s28, 1
      %p233 = por %p231, %p232
      %p234 = scmp.ne.s32.totalorder %s225, %s226
      %p235 = scmp.eq.s32.totalorder %s28, 0
      %p236 = por %p234, %p235
      %p237 = scmp.ne.s32.totalorder %s225, %s226
      %p238 = scmp.eq.s32.totalorder %s29, 1
      %p239 = por %p237, %p238
      %p241 = scmp.ne.s32.totalorder %s226, %s240
      %p242 = scmp.eq.s32.totalorder %s29, 0
      %p243 = por %p241, %p242
      %s245 = sadd.s32 %s244, 1
      %p248 = scmp.eq.s32.totalorder %s23, 1
      %p249 = scmp.ne.s32.totalorder %s244, %s246
      %p250 = scmp.eq.s32.totalorder %s23, 0
      %p251 = por %p249, %p250
      %p252 = scmp.ne.s32.totalorder %s244, %s246
      %p253 = scmp.eq.s32.totalorder %s28, 1
      %p254 = por %p252, %p253
      %p255 = scmp.ne.s32.totalorder %s246, %s247
      %p256 = scmp.eq.s32.totalorder %s28, 0
      %p257 = por %p255, %p256
      %p258 = scmp.ne.s32.totalorder %s246, %s247
      %p259 = scmp.eq.s32.totalorder %s29, 1
      %p260 = por %p258, %p259
      %p262 = scmp.ne.s32.totalorder %s247, %s261
      %p263 = scmp.eq.s32.totalorder %s29, 0
      %p264 = por %p262, %p263
      %s266 = sadd.s32 %s265, 1
      %p269 = scmp.eq.s32.totalorder %s23, 1
      %p270 = scmp.ne.s32.totalorder %s265, %s267
      %p271 = scmp.eq.s32.totalorder %s23, 0
      %p272 = por %p270, %p271
      %p273 = scmp.ne.s32.totalorder %s265, %s267
      %p274 = scmp.eq.s32.totalorder %s28, 1
      %p275 = por %p273, %p274
      %p276 = scmp.ne.s32.totalorder %s267, %s268
      %p277 = scmp.eq.s32.totalorder %s28, 0
      %p278 = por %p276, %p277
      %p279 = scmp.ne.s32.totalorder %s267, %s268
      %p280 = scmp.eq.s32.totalorder %s29, 1
      %p281 = por %p279, %p280
      %p283 = scmp.ne.s32.totalorder %s268, %s282
      %p284 = scmp.eq.s32.totalorder %s29, 0
      %p285 = por %p283, %p284
      %s287 = sadd.s32 %s286, 1
      %p290 = scmp.eq.s32.totalorder %s23, 1
      %p291 = scmp.ne.s32.totalorder %s286, %s288
      %p292 = scmp.eq.s32.totalorder %s23, 0
      %p293 = por %p291, %p292
      %p294 = scmp.ne.s32.totalorder %s286, %s288
      %p295 = scmp.eq.s32.totalorder %s28, 1
      %p296 = por %p294, %p295
      %p297 = scmp.ne.s32.totalorder %s288, %s289
      %p298 = scmp.eq.s32.totalorder %s28, 0
      %p299 = por %p297, %p298
      %p300 = scmp.ne.s32.totalorder %s288, %s289
      %p301 = scmp.eq.s32.totalorder %s29, 1
      %p302 = por %p300, %p301
      %p304 = scmp.ne.s32.totalorder %s289, %s303
      %p305 = scmp.eq.s32.totalorder %s29, 0
      %p306 = por %p304, %p305
      %s308 = sadd.s32 %s307, 1
      %p311 = scmp.eq.s32.totalorder %s23, 1
      %p312 = scmp.ne.s32.totalorder %s307, %s309
      %p313 = scmp.eq.s32.totalorder %s23, 0
      %p314 = por %p312, %p313
      %p315 = scmp.ne.s32.totalorder %s307, %s309
      %p316 = scmp.eq.s32.totalorder %s28, 1
      %p317 = por %p315, %p316
      %p318 = scmp.ne.s32.totalorder %s309, %s310
      %p319 = scmp.eq.s32.totalorder %s28, 0
      %p320 = por %p318, %p319
      %p321 = scmp.ne.s32.totalorder %s309, %s310
      %p322 = scmp.eq.s32.totalorder %s29, 1
      %p323 = por %p321, %p322
      %p325 = scmp.ne.s32.totalorder %s310, %s324
      %p326 = scmp.eq.s32.totalorder %s29, 0
      %p327 = por %p325, %p326
      %s329 = sadd.s32 %s328, 1
      %p332 = scmp.eq.s32.totalorder %s23, 1
      %p333 = scmp.ne.s32.totalorder %s328, %s330
      %p334 = scmp.eq.s32.totalorder %s23, 0
      %p335 = por %p333, %p334
      %p336 = scmp.ne.s32.totalorder %s328, %s330
      %p337 = scmp.eq.s32.totalorder %s28, 1
      %p338 = por %p336, %p337
      %p339 = scmp.ne.s32.totalorder %s330, %s331
      %p340 = scmp.eq.s32.totalorder %s28, 0
      %p341 = por %p339, %p340
      %p342 = scmp.ne.s32.totalorder %s330, %s331
      %p343 = scmp.eq.s32.totalorder %s29, 1
      %p344 = por %p342, %p343
      %p346 = scmp.ne.s32.totalorder %s331, %s345
      %p347 = scmp.eq.s32.totalorder %s29, 0
      %p348 = por %p346, %p347
      %s349 = ssub.s32 %s30, %s42
      %s350 = ssub.s32 %s31, %s38
      %s351 = sor.u32 %s349, %s350
      %p352 = scmp.eq.s32.totalorder %s351, 0
      %s354 = sadd.s32 %s353, 1
      %s355 = scalar_select %p352, %s353, %s354
      %p358 = pneg %p352
      %p359 = scmp.eq.s32.totalorder %s23, 1
      %p360 = por %p358, %p359
      %p361 = scmp.ne.s32.totalorder %s353, %s356
      %p362 = scmp.eq.s32.totalorder %s23, 0
      %p363 = por %p361, %p362
      %p364 = scmp.ne.s32.totalorder %s353, %s356
      %p365 = scmp.eq.s32.totalorder %s28, 1
      %p366 = por %p364, %p365
      %p367 = scmp.ne.s32.totalorder %s356, %s357
      %p368 = scmp.eq.s32.totalorder %s28, 0
      %p369 = por %p367, %p368
      %p370 = scmp.ne.s32.totalorder %s356, %s357
      %p371 = scmp.eq.s32.totalorder %s29, 1
      %p372 = por %p370, %p371
      %p374 = scmp.ne.s32.totalorder %s357, %s373
      %p375 = scmp.eq.s32.totalorder %s29, 0
      %p376 = por %p374, %p375
      %p377 = scmp.le.s32.totalorder 1, %s23
      %p378 = scmp.lt.s32.totalorder %s23, 3
      %p379 = pnand %p377, %p378
      %p380 = pneg %p379
      // Predicated region
      $region9: #{tpu_custom_call.1} parent=5 // pred_check
        _
      $region10: #{tpu_custom_call.1} parent=5 // pred_check_branch
        %382 = sbr.rel (%p379) target = $region12
      $region11: #{tpu_custom_call.1} parent=5 // pred_region
        %s383 = ssub.s32 %s23, 1
        // Predicated region
        $region13: #{tpu_custom_call.1} parent=11 // pred_check
          %p384 = pneg %p110
        $region14: #{tpu_custom_call.1} parent=11 // pred_check_branch
          %386 = sbr.rel (%p384) target = $region16
        $region15: #{tpu_custom_call.1} parent=11 // pred_region
          _
        $region16: #{tpu_custom_call.1} parent=11 // pred_fallthru
          _
        // Predicated region
        $region17: #{tpu_custom_call.1} parent=11 // pred_check
          %p387 = pneg %p131
        $region18: #{tpu_custom_call.1} parent=11 // pred_check_branch
          %389 = sbr.rel (%p387) target = $region20
        $region19: #{tpu_custom_call.1} parent=11 // pred_region
          _
        $region20: #{tpu_custom_call.1} parent=11 // pred_fallthru
          _
        // Predicated region
        $region21: #{tpu_custom_call.1} parent=11 // pred_check
          %p390 = pneg %p152
        $region22: #{tpu_custom_call.1} parent=11 // pred_check_branch
          %392 = sbr.rel (%p390) target = $region24
        $region23: #{tpu_custom_call.1} parent=11 // pred_region
          _
        $region24: #{tpu_custom_call.1} parent=11 // pred_fallthru
          _
        // Predicated region
        $region25: #{tpu_custom_call.1} parent=11 // pred_check
          %p393 = pneg %p173
        $region26: #{tpu_custom_call.1} parent=11 // pred_check_branch
          %395 = sbr.rel (%p393) target = $region28
        $region27: #{tpu_custom_call.1} parent=11 // pred_region
          _
        $region28: #{tpu_custom_call.1} parent=11 // pred_fallthru
          _
        // Predicated region
        $region29: #{tpu_custom_call.1} parent=11 // pred_check
          %p396 = pneg %p194
        $region30: #{tpu_custom_call.1} parent=11 // pred_check_branch
          %398 = sbr.rel (%p396) target = $region32
        $region31: #{tpu_custom_call.1} parent=11 // pred_region
          _
        $region32: #{tpu_custom_call.1} parent=11 // pred_fallthru
          _
        // Predicated region
        $region33: #{tpu_custom_call.1} parent=11 // pred_check
          %p399 = pneg %p215
        $region34: #{tpu_custom_call.1} parent=11 // pred_check_branch
          %401 = sbr.rel (%p399) target = $region36
        $region35: #{tpu_custom_call.1} parent=11 // pred_region
          _
        $region36: #{tpu_custom_call.1} parent=11 // pred_fallthru
          _
        // Predicated region
        $region37: #{tpu_custom_call.1} parent=11 // pred_check
          %p402 = pneg %p236
        $region38: #{tpu_custom_call.1} parent=11 // pred_check_branch
          %404 = sbr.rel (%p402) target = $region40
        $region39: #{tpu_custom_call.1} parent=11 // pred_region
          _
        $region40: #{tpu_custom_call.1} parent=11 // pred_fallthru
          _
        // Predicated region
        $region41: #{tpu_custom_call.1} parent=11 // pred_check
          %p405 = pneg %p257
        $region42: #{tpu_custom_call.1} parent=11 // pred_check_branch
          %407 = sbr.rel (%p405) target = $region44
        $region43: #{tpu_custom_call.1} parent=11 // pred_region
          _
        $region44: #{tpu_custom_call.1} parent=11 // pred_fallthru
          _
        // Predicated region
        $region45: #{tpu_custom_call.1} parent=11 // pred_check
          %p408 = pneg %p278
        $region46: #{tpu_custom_call.1} parent=11 // pred_check_branch
          %410 = sbr.rel (%p408) target = $region48
        $region47: #{tpu_custom_call.1} parent=11 // pred_region
          _
        $region48: #{tpu_custom_call.1} parent=11 // pred_fallthru
          _
        // Predicated region
        $region49: #{tpu_custom_call.1} parent=11 // pred_check
          %p411 = pneg %p299
        $region50: #{tpu_custom_call.1} parent=11 // pred_check_branch
          %413 = sbr.rel (%p411) target = $region52
        $region51: #{tpu_custom_call.1} parent=11 // pred_region
          _
        $region52: #{tpu_custom_call.1} parent=11 // pred_fallthru
          _
        // Predicated region
        $region53: #{tpu_custom_call.1} parent=11 // pred_check
          %p414 = pneg %p320
        $region54: #{tpu_custom_call.1} parent=11 // pred_check_branch
          %416 = sbr.rel (%p414) target = $region56
        $region55: #{tpu_custom_call.1} parent=11 // pred_region
          _
        $region56: #{tpu_custom_call.1} parent=11 // pred_fallthru
          _
        // Predicated region
        $region57: #{tpu_custom_call.1} parent=11 // pred_check
          %p417 = pneg %p341
        $region58: #{tpu_custom_call.1} parent=11 // pred_check_branch
          %419 = sbr.rel (%p417) target = $region60
        $region59: #{tpu_custom_call.1} parent=11 // pred_region
          _
        $region60: #{tpu_custom_call.1} parent=11 // pred_fallthru
          _
      $region12: #{tpu_custom_call.1} parent=5 // pred_fallthru
        _
      %p420 = scmp.lt.s32.totalorder %s23, 2
      // Predicated region
      $region61: #{tpu_custom_call.1} parent=5 // pred_check
        %p421 = pneg %p420
      $region62: #{tpu_custom_call.1} parent=5 // pred_check_branch
        %423 = sbr.rel (%p421) target = $region64
      $region63: #{tpu_custom_call.1} parent=5 // pred_region
        // Predicated region
        $region65: #{tpu_custom_call.1} parent=63 // pred_check
          %p424 = pneg %p55
        $region66: #{tpu_custom_call.1} parent=63 // pred_check_branch
          %426 = sbr.rel (%p424) target = $region68
        $region67: #{tpu_custom_call.1} parent=63 // pred_region
          %p427 = scmp.lt.s32.totalorder %s30, 1
          %s428 = scalar_select %p427, %s30, 1
          %s429 = smul.addr %s428, 4
          %s430 = scalar_lea.vmem %s0, %s429
        $region68: #{tpu_custom_call.1} parent=63 // pred_fallthru
          _
        // Predicated region
        $region69: #{tpu_custom_call.1} parent=63 // pred_check
          %p431 = pneg %p83
        $region70: #{tpu_custom_call.1} parent=63 // pred_check_branch
          %433 = sbr.rel (%p431) target = $region72
        $region71: #{tpu_custom_call.1} parent=63 // pred_region
          %p434 = scmp.lt.s32.totalorder %s30, 1
          %s435 = scalar_select %p434, %s30, 1
          %p436 = scmp.lt.s32.totalorder %s31, 0
          %s437 = scalar_select %p436, %s31, 0
          %s438 = sadd.s32 %s437, %s435
          %s439 = smul.addr %s438, 4
          %s440 = scalar_lea.vmem %s1, %s439
        $region72: #{tpu_custom_call.1} parent=63 // pred_fallthru
          _
      $region64: #{tpu_custom_call.1} parent=5 // pred_fallthru
        _
      %p441 = scmp.le.s32.totalorder 1, %s23
      %p442 = scmp.lt.s32.totalorder %s23, 3
      %p443 = pnand %p441, %p442
      %p444 = pneg %p443
      // Predicated region
      $region73: #{tpu_custom_call.1} parent=5 // pred_check
        _
      $region74: #{tpu_custom_call.1} parent=5 // pred_check_branch
        %446 = sbr.rel (%p443) target = $region76
      $region75: #{tpu_custom_call.1} parent=5 // pred_region
        %s447 = ssub.s32 %s23, 1
        %p448 = scmp.lt.s32.totalorder %s32, 1
        %s449 = scalar_select %p448, %s32, 1
        %s450 = smul.addr %s449, 4
        %s451 = scalar_lea.vmem %s0, %s450
        %p452 = pneg %p61
        %p453 = pneg %p58
        %p454 = scmp.lt.s32.totalorder %s32, 1
        %s455 = scalar_select %p454, %s32, 1
        %p456 = scmp.lt.s32.totalorder %s33, 0
        %s457 = scalar_select %p456, %s33, 0
        %s458 = sadd.s32 %s457, %s455
        %s459 = smul.addr %s458, 4
        %s460 = scalar_lea.vmem %s1, %s459
        %p461 = pneg %p89
        %p462 = pneg %p86
        %p463 = pneg %p110
        %p464 = pneg %p107
        %p465 = pneg %p131
        %p466 = pneg %p128
        %p467 = pneg %p152
        %p468 = pneg %p149
        %p469 = pneg %p173
        %p470 = pneg %p170
        %p471 = pneg %p194
        %p472 = pneg %p191
        %p473 = pneg %p215
        %p474 = pneg %p212
        %p475 = pneg %p236
        %p476 = pneg %p233
        %p477 = pneg %p257
        %p478 = pneg %p254
        %p479 = pneg %p278
        %p480 = pneg %p275
        %p481 = pneg %p299
        %p482 = pneg %p296
        %p483 = pneg %p320
        %p484 = pneg %p317
        %p485 = pneg %p341
        %p486 = pneg %p338
        %p487 = pneg %p369
        %p488 = pneg %p366
        %s489 = sand.u32 %s356, 1
        %s490 = scalar_lea.sflag [#allocation6], %s489
        %s491 = sand.u32 %s356, 1
        %s492 = smul.addr %s491, 8
        %s493 = scalar_lea.vmem [#allocation5], %s492
        %p494 = scmp.lt.s32.totalorder %s32, 1
        %s495 = scalar_select %p494, %s32, 1
        %s496 = smul.addr %s495, 4
        %s497 = scalar_lea.vmem %s0, %s496
        %p498 = scmp.lt.s32.totalorder %s32, 1
        %s499 = scalar_select %p498, %s32, 1
        %p500 = scmp.lt.s32.totalorder %s33, 0
        %s501 = scalar_select %p500, %s33, 0
        %s502 = sadd.s32 %s501, %s499
        %s503 = smul.addr %s502, 4
        %s504 = scalar_lea.vmem %s1, %s503
        %p506 = scmp.eq.s32.totalorder %s33, 0
        // Predicated region
        $region77: #{tpu_custom_call.1} parent=75 // pred_check
          %p507 = pneg %p506
        $region78: #{tpu_custom_call.1} parent=75 // pred_check_branch
          %509 = sbr.rel (%p507) target = $region80
        $region79: #{tpu_custom_call.1} parent=75 // pred_region
          %v510 = vld [vmem:[%s497] sm:$0xf]
          %v511 = vunpack.c.l.bf16 %v510
          %v512 = vld [vmem:[%s10] sm:$0x1]
          %v513 = vld [vmem:[%s11] sm:$0x1]
          %vm514 = vcmask 261120
          %v515 = vsel %vm514, %v511, 0.0
          %516 = vadd.xlane.f32.xlu0 %v515
          %v517 = vpop.xlane.xlu0 %516
          %v518 = vrcp.pop 32.0
          %v519 = vmul.f32 32.0, %v518
          %v520 = vsub.f32 1.0, %v519
          %v521 = vmul.f32 %v518, %v520
          %v522 = vadd.f32 %v518, %v521
          %vm523 = vweird.f32 %v518
          %v524 = vsel %vm523, %v518, %v522
          %v525 = vmul.f32 %v517, %v524
          %v526 = vsub.f32 %v511, %v525
          %v527 = vmul.f32 %v526, %v526
          %v528 = vsel %vm514, %v527, 0.0
          %529 = vadd.xlane.f32.xlu0 %v528
          %v530 = vpop.xlane.xlu0 %529
          %v531 = vmul.f32 %v530, %v524
          %v532 = vadd.f32 %v531, 1e-05
          %v533 = vrsqrt.pop %v532
          %v534 = vmul.f32 %v533, %v532
          %v535 = vmul.f32 %v534, %v533
          %v536 = vmul.f32 0.5, %v535
          %v537 = vsub.f32 1.5, %v536
          %v538 = vmul.f32 %v533, %v537
          %vm539 = vweird.f32 %v532
          %vm540 = vweird.f32 %v533
          %vm541 = vmor %vm539, %vm540
          %v542 = vsel %vm541, %v533, %v538
          %v543 = vmul.f32 %v526, %v542
          %v545 = vperm.slane %v512, 0
          %v547 = vmul.f32 %v543, %v545
          %v549 = vperm.slane %v513, 0
          %v551 = vadd.f32 %v547, %v549
          %v552 = vpack.c.bf16 %v551, %v551
          %v553 = vld [vmem:[%s2] sm:$0xf]
          %v554 = vld [vmem:[%s2 + $0x4] sm:$0xf]
          %v555 = vld [vmem:[%s2 + $0x8] sm:$0xf]
          %v556 = vld [vmem:[%s2 + $0xc] sm:$0xf]
          %v557 = vld [vmem:[%s3] sm:$0x1]
          %v559 = vperm.slane %v557, 0
          %v565 = vunpack.c.l.b16 %v553
          %v566 = vunpack.c.l.b16 %v554
          %v567 = vunpack.c.l.b16 %v555
          %v568 = vunpack.c.l.b16 %v556
          %v569 = vpack.c.b16 %v566, %v565
          %v570 = vpack.c.b16 %v568, %v567
          %v574 = vsel %vm514, %v552, 0
          %576 = vmatpush.bf16.msra.mxu0 0
          %577 = vmatpush.bf16.msra.mxu0 0
          %578 = vmatpush.bf16.msra.mxu0 0
          %579 = vmatpush.bf16.msra.mxu0 0
          %580 = vmatpush.bf16.msra.mxu0 0
          %581 = vmatpush.bf16.msra.mxu0 0
          %582 = vmatpush.bf16.msra.mxu0 %v570
          %583 = vmatpush.bf16.msra.mxu0 %v569
          %584 = vmatmul.bf16.gmra.mxu0 %v574
          %v585 = vpop.f32.mrf.mxu0
          %v586 = vadd.f32 %v559, %v585
          %v587 = vpop.f32.mrf.mxu0
          %588 = vdwg.mxu0
          %v589 = vpack.c.bf16 %v586, %v586
          %vm590 = vcmask 60416
          %591 = vst.msk [vmem:[#allocation2] sm:$0xf] %vm590, %v589
          %593 = vrot.lane.b32.xlu0 %v589, 96
          %v594 = vpop.permute.xlu0 %593
          %596 = vst.msk [vmem:[#allocation3] sm:$0xf] %vm590, %v594
          %597 = vrot.lane.b32.xlu0 %v589, 64
          %v598 = vpop.permute.xlu0 %597
          %600 = vst.msk [vmem:[#allocation4] sm:$0xf] %vm590, %v598
          %601 = vrot.lane.b32.xlu0 %v589, 120
          %v602 = vpop.permute.xlu0 %601
          %s604 = scalar_lea.vmem [#allocation2], 4
          %605 = vst.msk [vmem:[%s604] sm:$0xf] %vm590, %v602
          %606 = vrot.lane.b32.xlu0 %v589, 88
          %v607 = vpop.permute.xlu0 %606
          %s609 = scalar_lea.vmem [#allocation3], 4
          %610 = vst.msk [vmem:[%s609] sm:$0xf] %vm590, %v607
          %611 = vrot.lane.b32.xlu0 %v589, 56
          %v612 = vpop.permute.xlu0 %611
          %s614 = scalar_lea.vmem [#allocation4], 4
          %615 = vst.msk [vmem:[%s614] sm:$0xf] %vm590, %v612
          %616 = vrot.lane.b32.xlu0 %v589, 112
          %v617 = vpop.permute.xlu0 %616
          %s619 = scalar_lea.vmem [#allocation2], 8
          %620 = vst.msk [vmem:[%s619] sm:$0xf] %vm590, %v617
          %621 = vrot.lane.b32.xlu0 %v589, 80
          %v622 = vpop.permute.xlu0 %621
          %s624 = scalar_lea.vmem [#allocation3], 8
          %625 = vst.msk [vmem:[%s624] sm:$0xf] %vm590, %v622
          %626 = vrot.lane.b32.xlu0 %v589, 48
          %v627 = vpop.permute.xlu0 %626
          %s629 = scalar_lea.vmem [#allocation4], 8
          %630 = vst.msk [vmem:[%s629] sm:$0xf] %vm590, %v627
          %631 = vrot.lane.b32.xlu0 %v589, 104
          %v632 = vpop.permute.xlu0 %631
          %s634 = scalar_lea.vmem [#allocation2], 12
          %635 = vst.msk [vmem:[%s634] sm:$0xf] %vm590, %v632
          %636 = vrot.lane.b32.xlu0 %v589, 72
          %v637 = vpop.permute.xlu0 %636
          %s639 = scalar_lea.vmem [#allocation3], 12
          %640 = vst.msk [vmem:[%s639] sm:$0xf] %vm590, %v637
          %641 = vrot.lane.b32.xlu0 %v589, 40
          %v642 = vpop.permute.xlu0 %641
          %s644 = scalar_lea.vmem [#allocation4], 12
          %645 = vst.msk [vmem:[%s644] sm:$0xf] %vm590, %v642
        $region80: #{tpu_custom_call.1} parent=75 // pred_fallthru
          _
        %v646 = vld [vmem:[#allocation2] sm:$0xf]
        %v647 = vld [vmem:[#allocation2 + $0x4] sm:$0xf]
        %v648 = vld [vmem:[#allocation2 + $0x8] sm:$0xf]
        %v649 = vld [vmem:[#allocation2 + $0xc] sm:$0xf]
        %v650 = vld [vmem:[#allocation3] sm:$0xf]
        %v651 = vld [vmem:[#allocation3 + $0x4] sm:$0xf]
        %v652 = vld [vmem:[#allocation3 + $0x8] sm:$0xf]
        %v653 = vld [vmem:[#allocation3 + $0xc] sm:$0xf]
        %v654 = vld [vmem:[#allocation4] sm:$0xf]
        %v655 = vld [vmem:[#allocation4 + $0x4] sm:$0xf]
        %v656 = vld [vmem:[#allocation4 + $0x8] sm:$0xf]
        %v657 = vld [vmem:[#allocation4 + $0xc] sm:$0xf]
        %vm658 = vcmask 64512
        %v660 = vsel %vm658, %v646, 0
        %v663 = vsel %vm658, %v650, 0
        %665 = vmatpush.bf16.xpose.msra.mxu0 0
        %666 = vmatpush.bf16.xpose.msra.mxu0 0
        %667 = vmatpush.bf16.xpose.msra.mxu0 0
        %668 = vmatpush.bf16.xpose.msra.mxu0 0
        %669 = vmatpush.bf16.xpose.msra.mxu0 0
        %670 = vmatpush.bf16.xpose.msra.mxu0 0
        %671 = vmatpush.bf16.xpose.msra.mxu0 0
        %672 = vmatpush.bf16.xpose.msra.mxu0 %v663
        %673 = vmatmul.bf16.gmra.mxu0 %v660
        %v674 = vpop.f32.mrf.mxu0
        %v675 = vadd.f32 0.0, %v674
        %v676 = vpop.f32.mrf.mxu0
        %677 = vdwg.mxu0
        %v679 = vsel %vm658, %v647, 0
        %v682 = vsel %vm658, %v651, 0
        %684 = vmatpush.bf16.xpose.msra.mxu0 0
        %685 = vmatpush.bf16.xpose.msra.mxu0 0
        %686 = vmatpush.bf16.xpose.msra.mxu0 0
        %687 = vmatpush.bf16.xpose.msra.mxu0 0
        %688 = vmatpush.bf16.xpose.msra.mxu0 0
        %689 = vmatpush.bf16.xpose.msra.mxu0 0
        %690 = vmatpush.bf16.xpose.msra.mxu0 0
        %691 = vmatpush.bf16.xpose.msra.mxu0 %v682
        %692 = vmatmul.bf16.gmra.mxu0 %v679
        %v693 = vpop.f32.mrf.mxu0
        %v694 = vadd.f32 0.0, %v693
        %v695 = vpop.f32.mrf.mxu0
        %696 = vdwg.mxu0
        %v698 = vsel %vm658, %v648, 0
        %v701 = vsel %vm658, %v652, 0
        %703 = vmatpush.bf16.xpose.msra.mxu0 0
        %704 = vmatpush.bf16.xpose.msra.mxu0 0
        %705 = vmatpush.bf16.xpose.msra.mxu0 0
        %706 = vmatpush.bf16.xpose.msra.mxu0 0
        %707 = vmatpush.bf16.xpose.msra.mxu0 0
        %708 = vmatpush.bf16.xpose.msra.mxu0 0
        %709 = vmatpush.bf16.xpose.msra.mxu0 0
        %710 = vmatpush.bf16.xpose.msra.mxu0 %v701
        %711 = vmatmul.bf16.gmra.mxu0 %v698
        %v712 = vpop.f32.mrf.mxu0
        %v713 = vadd.f32 0.0, %v712
        %v714 = vpop.f32.mrf.mxu0
        %715 = vdwg.mxu0
        %v717 = vsel %vm658, %v649, 0
        %v720 = vsel %vm658, %v653, 0
        %722 = vmatpush.bf16.xpose.msra.mxu0 0
        %723 = vmatpush.bf16.xpose.msra.mxu0 0
        %724 = vmatpush.bf16.xpose.msra.mxu0 0
        %725 = vmatpush.bf16.xpose.msra.mxu0 0
        %726 = vmatpush.bf16.xpose.msra.mxu0 0
        %727 = vmatpush.bf16.xpose.msra.mxu0 0
        %728 = vmatpush.bf16.xpose.msra.mxu0 0
        %729 = vmatpush.bf16.xpose.msra.mxu0 %v720
        %730 = vmatmul.bf16.gmra.mxu0 %v717
        %v731 = vpop.f32.mrf.mxu0
        %v732 = vadd.f32 0.0, %v731
        %v733 = vpop.f32.mrf.mxu0
        %734 = vdwg.mxu0
        %v735 = vmul.f32 %v675, 0.35355338
        %v736 = vmul.f32 %v694, 0.35355338
        %v737 = vmul.f32 %v713, 0.35355338
        %v738 = vmul.f32 %v732, 0.35355338
        %v739 = vsel %vm658, %v735, -inf
        %740 = vmax.xlane.f32.xlu0 %v739
        %v741 = vpop.xlane.xlu0 %740
        %v742 = vsel %vm658, %v736, -inf
        %743 = vmax.xlane.f32.xlu0 %v742
        %v744 = vpop.xlane.xlu0 %743
        %v745 = vsel %vm658, %v737, -inf
        %746 = vmax.xlane.f32.xlu0 %v745
        %v747 = vpop.xlane.xlu0 %746
        %v748 = vsel %vm658, %v738, -inf
        %749 = vmax.xlane.f32.xlu0 %v748
        %v750 = vpop.xlane.xlu0 %749
        %v751 = vsub.f32 %v735, %v741
        %v752 = vsub.f32 %v736, %v744
        %v753 = vsub.f32 %v737, %v747
        %v754 = vsub.f32 %v738, %v750
        %v755 = vmul.f32 %v751, 1.442695
        %v756 = vpow.pop %v755
        %v757 = vmul.f32 %v752, 1.442695
        %v758 = vpow.pop %v757
        %v759 = vmul.f32 %v753, 1.442695
        %v760 = vpow.pop %v759
        %v761 = vmul.f32 %v754, 1.442695
        %v762 = vpow.pop %v761
        %v763 = vsel %vm658, %v756, 0.0
        %764 = vadd.xlane.f32.xlu0 %v763
        %v765 = vpop.xlane.xlu0 %764
        %v766 = vsel %vm658, %v758, 0.0
        %767 = vadd.xlane.f32.xlu0 %v766
        %v768 = vpop.xlane.xlu0 %767
        %v769 = vsel %vm658, %v760, 0.0
        %770 = vadd.xlane.f32.xlu0 %v769
        %v771 = vpop.xlane.xlu0 %770
        %v772 = vsel %vm658, %v762, 0.0
        %773 = vadd.xlane.f32.xlu0 %v772
        %v774 = vpop.xlane.xlu0 %773
        %v775 = vrcp.pop %v765
        %v776 = vrcp.pop %v768
        %v777 = vrcp.pop %v771
        %v778 = vrcp.pop %v774
        %v779 = vmul.f32 %v756, %v775
        %v780 = vmul.f32 %v758, %v776
        %v781 = vmul.f32 %v760, %v777
        %v782 = vmul.f32 %v762, %v778
        %v783 = vpack.c.bf16 %v779, %v779
        %v784 = vpack.c.bf16 %v780, %v780
        %v785 = vpack.c.bf16 %v781, %v781
        %v786 = vpack.c.bf16 %v782, %v782
        %v788 = vsel %vm658, %v783, 0
        %vm790 = vcmask 1043456
        %v792 = vsel %vm790, %v654, 0
        %794 = vmatpush.bf16.msra.mxu0 0
        %795 = vmatpush.bf16.msra.mxu0 0
        %796 = vmatpush.bf16.msra.mxu0 0
        %797 = vmatpush.bf16.msra.mxu0 0
        %798 = vmatpush.bf16.msra.mxu0 0
        %799 = vmatpush.bf16.msra.mxu0 0
        %800 = vmatpush.bf16.msra.mxu0 0
        %801 = vmatpush.bf16.msra.mxu0 %v792
        %802 = vmatmul.bf16.gmra.mxu0 %v788
        %v803 = vpop.f32.mrf.mxu0
        %v804 = vadd.f32 0.0, %v803
        %v805 = vpop.f32.mrf.mxu0
        %806 = vdwg.mxu0
        %v808 = vsel %vm658, %v784, 0
        %v811 = vsel %vm790, %v655, 0
        %813 = vmatpush.bf16.msra.mxu0 0
        %814 = vmatpush.bf16.msra.mxu0 0
        %815 = vmatpush.bf16.msra.mxu0 0
        %816 = vmatpush.bf16.msra.mxu0 0
        %817 = vmatpush.bf16.msra.mxu0 0
        %818 = vmatpush.bf16.msra.mxu0 0
        %819 = vmatpush.bf16.msra.mxu0 0
        %820 = vmatpush.bf16.msra.mxu0 %v811
        %821 = vmatmul.bf16.gmra.mxu0 %v808
        %v822 = vpop.f32.mrf.mxu0
        %v823 = vadd.f32 0.0, %v822
        %v824 = vpop.f32.mrf.mxu0
        %825 = vdwg.mxu0
        %v827 = vsel %vm658, %v785, 0
        %v830 = vsel %vm790, %v656, 0
        %832 = vmatpush.bf16.msra.mxu0 0
        %833 = vmatpush.bf16.msra.mxu0 0
        %834 = vmatpush.bf16.msra.mxu0 0
        %835 = vmatpush.bf16.msra.mxu0 0
        %836 = vmatpush.bf16.msra.mxu0 0
        %837 = vmatpush.bf16.msra.mxu0 0
        %838 = vmatpush.bf16.msra.mxu0 0
        %839 = vmatpush.bf16.msra.mxu0 %v830
        %840 = vmatmul.bf16.gmra.mxu0 %v827
        %v841 = vpop.f32.mrf.mxu0
        %v842 = vadd.f32 0.0, %v841
        %v843 = vpop.f32.mrf.mxu0
        %844 = vdwg.mxu0
        %v846 = vsel %vm658, %v786, 0
        %v849 = vsel %vm790, %v657, 0
        %851 = vmatpush.bf16.msra.mxu0 0
        %852 = vmatpush.bf16.msra.mxu0 0
        %853 = vmatpush.bf16.msra.mxu0 0
        %854 = vmatpush.bf16.msra.mxu0 0
        %855 = vmatpush.bf16.msra.mxu0 0
        %856 = vmatpush.bf16.msra.mxu0 0
        %857 = vmatpush.bf16.msra.mxu0 0
        %858 = vmatpush.bf16.msra.mxu0 %v849
        %859 = vmatmul.bf16.gmra.mxu0 %v846
        %v860 = vpop.f32.mrf.mxu0
        %v861 = vadd.f32 0.0, %v860
        %v862 = vpop.f32.mrf.mxu0
        %863 = vdwg.mxu0
        %v864 = vpack.c.bf16 %v804, %v804
        %v865 = vpack.c.bf16 %v823, %v823
        %v866 = vpack.c.bf16 %v842, %v842
        %v867 = vpack.c.bf16 %v861, %v861
        %v868 = vld [vmem:[%s4] sm:$0xf]
        %v869 = vld [vmem:[%s4 + $0x4] sm:$0xf]
        %v870 = vld [vmem:[%s4 + $0x8] sm:$0xf]
        %v871 = vld [vmem:[%s4 + $0xc] sm:$0xf]
        %v873 = vsel %vm658, %v864, 0
        %v876 = vsel %vm790, %v868, 0
        %878 = vmatpush.bf16.msra.mxu0 0
        %879 = vmatpush.bf16.msra.mxu0 0
        %880 = vmatpush.bf16.msra.mxu0 0
        %881 = vmatpush.bf16.msra.mxu0 0
        %882 = vmatpush.bf16.msra.mxu0 0
        %883 = vmatpush.bf16.msra.mxu0 0
        %884 = vmatpush.bf16.msra.mxu0 0
        %885 = vmatpush.bf16.msra.mxu0 %v876
        %886 = vmatmul.bf16.gmra.mxu0 %v873
        %v887 = vpop.f32.mrf.mxu0
        %v888 = vadd.f32 0.0, %v887
        %v889 = vpop.f32.mrf.mxu0
        %890 = vdwg.mxu0
        %v892 = vsel %vm658, %v865, 0
        %v895 = vsel %vm790, %v869, 0
        %897 = vmatpush.bf16.msra.mxu0 0
        %898 = vmatpush.bf16.msra.mxu0 0
        %899 = vmatpush.bf16.msra.mxu0 0
        %900 = vmatpush.bf16.msra.mxu0 0
        %901 = vmatpush.bf16.msra.mxu0 0
        %902 = vmatpush.bf16.msra.mxu0 0
        %903 = vmatpush.bf16.msra.mxu0 0
        %904 = vmatpush.bf16.msra.mxu0 %v895
        %905 = vmatmul.bf16.gmra.mxu0 %v892
        %v906 = vpop.f32.mrf.mxu0
        %v907 = vadd.f32 0.0, %v906
        %v908 = vpop.f32.mrf.mxu0
        %909 = vdwg.mxu0
        %v911 = vsel %vm658, %v866, 0
        %v914 = vsel %vm790, %v870, 0
        %916 = vmatpush.bf16.msra.mxu0 0
        %917 = vmatpush.bf16.msra.mxu0 0
        %918 = vmatpush.bf16.msra.mxu0 0
        %919 = vmatpush.bf16.msra.mxu0 0
        %920 = vmatpush.bf16.msra.mxu0 0
        %921 = vmatpush.bf16.msra.mxu0 0
        %922 = vmatpush.bf16.msra.mxu0 0
        %923 = vmatpush.bf16.msra.mxu0 %v914
        %924 = vmatmul.bf16.gmra.mxu0 %v911
        %v925 = vpop.f32.mrf.mxu0
        %v926 = vadd.f32 0.0, %v925
        %v927 = vpop.f32.mrf.mxu0
        %928 = vdwg.mxu0
        %v930 = vsel %vm658, %v867, 0
        %v933 = vsel %vm790, %v871, 0
        %935 = vmatpush.bf16.msra.mxu0 0
        %936 = vmatpush.bf16.msra.mxu0 0
        %937 = vmatpush.bf16.msra.mxu0 0
        %938 = vmatpush.bf16.msra.mxu0 0
        %939 = vmatpush.bf16.msra.mxu0 0
        %940 = vmatpush.bf16.msra.mxu0 0
        %941 = vmatpush.bf16.msra.mxu0 0
        %942 = vmatpush.bf16.msra.mxu0 %v933
        %943 = vmatmul.bf16.gmra.mxu0 %v930
        %v944 = vpop.f32.mrf.mxu0
        %v945 = vadd.f32 0.0, %v944
        %v946 = vpop.f32.mrf.mxu0
        %947 = vdwg.mxu0
        %vm948 = vcmask 261120
        %v949 = vsel %vm948, %v888, 0.0
        %v950 = vsel %vm948, %v907, 0.0
        %v951 = vadd.f32 %v949, %v950
        %v952 = vsel %vm948, %v926, 0.0
        %v953 = vadd.f32 %v951, %v952
        %v954 = vsel %vm948, %v945, 0.0
        %v955 = vadd.f32 %v953, %v954
        %v956 = vld [vmem:[%s5] sm:$0x1]
        %v958 = vperm.slane %v956, 0
        %v960 = vadd.f32 %v955, %v958
        %v961 = vld [vmem:[%s504] sm:$0xf]
        %v962 = vunpack.c.l.bf16 %v961
        %v963 = vadd.f32 %v962, %v960
        %v964 = vld [vmem:[%s12] sm:$0x1]
        %v965 = vld [vmem:[%s13] sm:$0x1]
        %v966 = vsel %vm948, %v963, 0.0
        %967 = vadd.xlane.f32.xlu0 %v966
        %v968 = vpop.xlane.xlu0 %967
        %v969 = vrcp.pop 32.0
        %v970 = vmul.f32 32.0, %v969
        %v971 = vsub.f32 1.0, %v970
        %v972 = vmul.f32 %v969, %v971
        %v973 = vadd.f32 %v969, %v972
        %vm974 = vweird.f32 %v969
        %v975 = vsel %vm974, %v969, %v973
        %v976 = vmul.f32 %v968, %v975
        %v977 = vsub.f32 %v963, %v976
        %v978 = vmul.f32 %v977, %v977
        %v979 = vsel %vm948, %v978, 0.0
        %980 = vadd.xlane.f32.xlu0 %v979
        %v981 = vpop.xlane.xlu0 %980
        %v982 = vmul.f32 %v981, %v975
        %v983 = vadd.f32 %v982, 1e-05
        %v984 = vrsqrt.pop %v983
        %v985 = vmul.f32 %v984, %v983
        %v986 = vmul.f32 %v985, %v984
        %v987 = vmul.f32 0.5, %v986
        %v988 = vsub.f32 1.5, %v987
        %v989 = vmul.f32 %v984, %v988
        %vm990 = vweird.f32 %v983
        %vm991 = vweird.f32 %v984
        %vm992 = vmor %vm990, %vm991
        %v993 = vsel %vm992, %v984, %v989
        %v994 = vmul.f32 %v977, %v993
        %v996 = vperm.slane %v964, 0
        %v998 = vmul.f32 %v994, %v996
        %v1000 = vperm.slane %v965, 0
        %v1002 = vadd.f32 %v998, %v1000
        %v1003 = vpack.c.bf16 %v1002, %v1002
        %v1004 = vld [vmem:[%s6] sm:$0xf]
        %v1005 = vld [vmem:[%s6 + $0x4] sm:$0xf]
        %v1006 = vld [vmem:[%s6 + $0x8] sm:$0xf]
        %v1007 = vld [vmem:[%s6 + $0xc] sm:$0xf]
        %v1008 = vld [vmem:[%s7] sm:$0x1]
        %v1010 = vperm.slane %v1008, 0
        %v1016 = vunpack.c.l.b16 %v1004
        %v1017 = vunpack.c.l.b16 %v1005
        %v1018 = vunpack.c.l.b16 %v1006
        %v1019 = vunpack.c.l.b16 %v1007
        %v1020 = vpack.c.b16 %v1017, %v1016
        %v1021 = vpack.c.b16 %v1019, %v1018
        %v1025 = vsel %vm948, %v1003, 0
        %1027 = vmatpush.bf16.msra.mxu0 0
        %1028 = vmatpush.bf16.msra.mxu0 0
        %1029 = vmatpush.bf16.msra.mxu0 0
        %1030 = vmatpush.bf16.msra.mxu0 0
        %1031 = vmatpush.bf16.msra.mxu0 0
        %1032 = vmatpush.bf16.msra.mxu0 0
        %1033 = vmatpush.bf16.msra.mxu0 %v1021
        %1034 = vmatpush.bf16.msra.mxu0 %v1020
        %1035 = vmatmul.bf16.gmra.mxu0 %v1025
        %v1036 = vpop.f32.mrf.mxu0
        %v1037 = vadd.f32 %v1010, %v1036
        %v1038 = vpop.f32.mrf.mxu0
        %1039 = vdwg.mxu0
        %v1040 = vmax.f32 %v1037, 0.0
        %v1041 = vpack.c.bf16 %v1040, %v1040
        %v1042 = vld [vmem:[%s8] sm:$0xf]
        %v1043 = vld [vmem:[%s8 + $0x4] sm:$0xf]
        %v1044 = vld [vmem:[%s8 + $0x8] sm:$0xf]
        %v1045 = vld [vmem:[%s8 + $0xc] sm:$0xf]
        %v1046 = vld [vmem:[%s8 + $0x10] sm:$0xf]
        %v1047 = vld [vmem:[%s8 + $0x14] sm:$0xf]
        %v1048 = vld [vmem:[%s8 + $0x18] sm:$0xf]
        %v1049 = vld [vmem:[%s8 + $0x1c] sm:$0xf]
        %v1050 = vld [vmem:[%s8 + $0x20] sm:$0xf]
        %v1051 = vld [vmem:[%s8 + $0x24] sm:$0xf]
        %v1052 = vld [vmem:[%s8 + $0x28] sm:$0xf]
        %v1053 = vld [vmem:[%s8 + $0x2c] sm:$0xf]
        %v1054 = vld [vmem:[%s8 + $0x30] sm:$0xf]
        %v1055 = vld [vmem:[%s8 + $0x34] sm:$0xf]
        %v1056 = vld [vmem:[%s8 + $0x38] sm:$0xf]
        %v1057 = vld [vmem:[%s8 + $0x3c] sm:$0xf]
        %v1058 = vld [vmem:[%s9] sm:$0x1]
        %v1060 = vperm.slane %v1058, 0
        %v1078 = vunpack.c.l.b16 %v1042
        %v1079 = vunpack.c.l.b16 %v1043
        %v1080 = vunpack.c.l.b16 %v1044
        %v1081 = vunpack.c.l.b16 %v1045
        %v1082 = vunpack.c.l.b16 %v1046
        %v1083 = vunpack.c.l.b16 %v1047
        %v1084 = vunpack.c.l.b16 %v1048
        %v1085 = vunpack.c.l.b16 %v1049
        %v1086 = vunpack.c.l.b16 %v1050
        %v1087 = vunpack.c.l.b16 %v1051
        %v1088 = vunpack.c.l.b16 %v1052
        %v1089 = vunpack.c.l.b16 %v1053
        %v1090 = vunpack.c.l.b16 %v1054
        %v1091 = vunpack.c.l.b16 %v1055
        %v1092 = vunpack.c.l.b16 %v1056
        %v1093 = vunpack.c.l.b16 %v1057
        %v1094 = vpack.c.b16 %v1079, %v1078
        %v1095 = vpack.c.b16 %v1081, %v1080
        %v1096 = vpack.c.b16 %v1083, %v1082
        %v1097 = vpack.c.b16 %v1085, %v1084
        %v1098 = vpack.c.b16 %v1087, %v1086
        %v1099 = vpack.c.b16 %v1089, %v1088
        %v1100 = vpack.c.b16 %v1091, %v1090
        %v1101 = vpack.c.b16 %v1093, %v1092
        %1110 = vmatpush.bf16.msra.mxu0 %v1101
        %1111 = vmatpush.bf16.msra.mxu0 %v1100
        %1112 = vmatpush.bf16.msra.mxu0 %v1099
        %1113 = vmatpush.bf16.msra.mxu0 %v1098
        %1114 = vmatpush.bf16.msra.mxu0 %v1097
        %1115 = vmatpush.bf16.msra.mxu0 %v1096
        %1116 = vmatpush.bf16.msra.mxu0 %v1095
        %1117 = vmatpush.bf16.msra.mxu0 %v1094
        %1118 = vmatmul.bf16.gmra.mxu0 %v1041
        %v1119 = vpop.f32.mrf.mxu0
        %v1120 = vadd.f32 %v1060, %v1119
        %v1121 = vpop.f32.mrf.mxu0
        %1122 = vdwg.mxu0
        %v1123 = vadd.f32 %v963, %v1120
        %1124 = vst.msk [vmem:[%s493] sm:$0xff] %vm948, %v1123
        %s1125 = sand.u32 %s356, 1
        %s1126 = scalar_lea.sflag [#allocation6], %s1125
        %s1127 = sand.u32 %s356, 1
        %s1128 = smul.addr %s1127, 8
        %s1129 = scalar_lea.vmem [#allocation5], %s1128
        // Predicated region
        $region81: #{tpu_custom_call.1} parent=75 // pred_check
          %p1130 = pneg %p366
        $region82: #{tpu_custom_call.1} parent=75 // pred_check_branch
          %1132 = sbr.rel (%p1130) target = $region84
        $region83: #{tpu_custom_call.1} parent=75 // pred_region
          %1134 = vsyncadd %s1126, 0
          %s1135 = sadd.s32 %s33, %s32
          %s1136 = smul.addr %s1135, 8
          %s1137 = scalar_lea.hbm %s14, %s1136
          %s1139 = sshll.u32 %s1129, 4
          %s1140 = int_to_ptr.vmem [resolvable:$true] %s1139
          %s1141 = sshll.u32 %s1137, 4
          %s1142 = int_to_ptr.hbm [resolvable:$true] %s1141
          %1144 = dma.vmem_to_hbm [thread:$0]  %s1140, 128, %s1142, %s1126
        $region84: #{tpu_custom_call.1} parent=75 // pred_fallthru
          _
      $region76: #{tpu_custom_call.1} parent=5 // pred_fallthru
        _
      %p1145 = scmp.le.s32.totalorder 2, %s23
      // Predicated region
      $region85: #{tpu_custom_call.1} parent=5 // pred_check
        %p1146 = pneg %p1145
      $region86: #{tpu_custom_call.1} parent=5 // pred_check_branch
        %1148 = sbr.rel (%p1146) target = $region88
      $region87: #{tpu_custom_call.1} parent=5 // pred_region
        %s1149 = ssub.s32 %s23, 2
        // Predicated region
        $region89: #{tpu_custom_call.1} parent=87 // pred_check
          %p1150 = pneg %p372
        $region90: #{tpu_custom_call.1} parent=87 // pred_check_branch
          %1152 = sbr.rel (%p1150) target = $region92
        $region91: #{tpu_custom_call.1} parent=87 // pred_region
          %s1153 = sand.u32 %s357, 1
          %s1154 = scalar_lea.sflag [#allocation6], %s1153
          %s1155 = sand.u32 %s357, 1
          %s1156 = smul.addr %s1155, 8
          %s1157 = scalar_lea.vmem [#allocation5], %s1156
          %1159 = dma.done %s1154, 128
        $region92: #{tpu_custom_call.1} parent=87 // pred_fallthru
          _
      $region88: #{tpu_custom_call.1} parent=5 // pred_fallthru
        _
    $region6: #{tpu_custom_call.1} parent=1 // loop_footer
      %s27 = sadd.s32 1, %s23
    $region7: #{tpu_custom_call.1} parent=1 // loop_footer_branch
      %22 = sbr.rel target = $region3
    $region8: #{tpu_custom_call.1} parent=1 // loop_exit
      _
    %1160 = vsyncpa [#allocation6], 1
    %s1161 = scalar_lea.sflag [#allocation6], 1
    %1162 = vsyncpa %s1161, 1

</llo_original>
